<compile_context>
chip_gen: v7x
topology: tpu7x:2x2x1
jax: 0.10.0
libtpu: 0.0.40
codegen_flags: <defaults>
</compile_context>

<pallas_src>
import functools

import jax
import jax.numpy as jnp
from jax.experimental import pallas as pl
from jax.experimental.pallas import tpu as pltpu

_VMEM_LIMIT = 48 * 1024 * 1024   # explicit scoped-VMEM budget (review: v7x has 64 MiB)


# ----------------------------- shared stage math -----------------------------
# These helpers are written so they work both on Pallas Refs (inside the kernels;
# only indexing/slicing is applied to `xp`, `masks`, `w_taps`) and on plain jnp
# arrays (the pure-JAX mirror used for the tight correctness check).

def _conv3x3_flat(xp, masks, w_taps, W, HW):
    """3x3 'same' conv (zero pad) on a row-padded flat activation slab.

    xp:     (Cin, HW + 2*W + 2)  row-zero-padded flat activations (W+1 each side)
    masks:  (2, HW)              row 0 zeroes col 0, row 1 zeroes col W-1
    w_taps: (9, Cout, Cin)       transposed per-tap weights, tap order (dy, dx)
    returns (Cout, HW) float32.
    """
    mask_w0 = masks[0:1, :]
    mask_w2 = masks[1:2, :]
    acc = None
    for dy in range(3):
        for dx in range(3):
            start = dy * W + dx                      # static offset
            xs = xp[:, start:start + HW]             # (Cin, HW) shifted view
            if dx == 0:                              # kill row-wrap leakage
                xs = xs * mask_w0
            elif dx == 2:
                xs = xs * mask_w2
            t = jnp.dot(w_taps[dy * 3 + dx], xs,
                        preferred_element_type=jnp.float32)
            acc = t if acc is None else acc + t
    return acc


def _inorm_lrelu_cm(x, gamma, beta):
    # InstanceNorm2d (biased var, eps=1e-5, affine) + LeakyReLU(0.01),
    # channel-major: x (C, HW), gamma/beta (C, 1), all stats in fp32.
    mean = jnp.mean(x, axis=1, keepdims=True)
    var = jnp.mean(jnp.square(x - mean), axis=1, keepdims=True)
    y = (x - mean) * jax.lax.rsqrt(var + 1e-5) * gamma + beta
    return jnp.where(y >= 0.0, y, 0.01 * y)


def _stage1_math(xp, seg, masks, w2f, b2, g1, be1, w3a, w3b, b3, *, W, HW):
    # folded conv1x1+conv3x3  -> InstanceNorm+LeakyReLU -> concat(seg) conv1x1
    acc = _conv3x3_flat(xp, masks, w2f, W, HW) + b2
    y = _inorm_lrelu_cm(acc, g1, be1)
    out = (jnp.dot(w3a, y.astype(w3a.dtype), preferred_element_type=jnp.float32)
           + jnp.dot(w3b, seg, preferred_element_type=jnp.float32)
           + b3)
    return out


def _stage2_math(xp, masks, w4t, b4, g2, be2, wh, bh, sigm, *, W, HW):
    # conv3x3 -> InstanceNorm+LeakyReLU -> fused heads (1x1 conv, 4 ch) + sigmoid
    acc = _conv3x3_flat(xp, masks, w4t, W, HW) + b4
    y = _inorm_lrelu_cm(acc, g2, be2)
    heads = jnp.dot(wh, y.astype(wh.dtype),
                    preferred_element_type=jnp.float32) + bh
    sig = jax.nn.sigmoid(heads)
    return sigm * sig + (1.0 - sigm) * heads        # sigmoid on rows 0 (pos) & 3 (width)


# ----------------------------- Pallas kernels --------------------------------

def _stage1_kernel(xp_ref, seg_ref, mask_ref, w2f_ref, b2_ref, g1_ref, be1_ref,
                   w3a_ref, w3b_ref, b3_ref, o_ref, *, W):
    HW = o_ref.shape[1]
    out = _stage1_math(xp_ref, seg_ref[...], mask_ref, w2f_ref,
                       b2_ref[...], g1_ref[...], be1_ref[...],
                       w3a_ref[...], w3b_ref[...], b3_ref[...], W=W, HW=HW)
    o_ref[...] = out.astype(o_ref.dtype)


def _stage2_kernel(xp_ref, mask_ref, w4_ref, b4_ref, g2_ref, be2_ref,
                   wh_ref, bh_ref, sigm_ref, o_ref, *, W):
    HW = o_ref.shape[1]
    out = _stage2_math(xp_ref, mask_ref, w4_ref,
                       b4_ref[...], g2_ref[...], be2_ref[...],
                       wh_ref[...], bh_ref[...], sigm_ref[...], W=W, HW=HW)
    o_ref[...] = out.astype(o_ref.dtype)


# ----------------------------- Pallas wrappers --------------------------------

def _stage1_pallas(xp, seg, masks, kp, W, h, out_dtype):
    B, C0, L = xp.shape
    segc, HW = seg.shape[1], seg.shape[2]
    kernel = functools.partial(_stage1_kernel, W=W)
    return pl.pallas_call(
        kernel,
        out_shape=jax.ShapeDtypeStruct((B, h, HW), out_dtype),
        grid=(B,),
        in_specs=[
            pl.BlockSpec((None, C0, L), lambda b: (b, 0, 0)),
            pl.BlockSpec((None, segc, HW), lambda b: (b, 0, 0)),
            pl.BlockSpec(masks.shape, lambda b: (0, 0)),
            pl.BlockSpec(kp["w2f"].shape, lambda b: (0, 0, 0)),
            pl.BlockSpec(kp["b2"].shape, lambda b: (0, 0)),
            pl.BlockSpec(kp["g1"].shape, lambda b: (0, 0)),
            pl.BlockSpec(kp["be1"].shape, lambda b: (0, 0)),
            pl.BlockSpec(kp["w3a"].shape, lambda b: (0, 0)),
            pl.BlockSpec(kp["w3b"].shape, lambda b: (0, 0)),
            pl.BlockSpec(kp["b3"].shape, lambda b: (0, 0)),
        ],
        out_specs=pl.BlockSpec((None, h, HW), lambda b: (b, 0, 0)),
        compiler_params=pltpu.CompilerParams(
            dimension_semantics=("parallel",),
            vmem_limit_bytes=_VMEM_LIMIT),
    )(xp, seg, masks, kp["w2f"], kp["b2"], kp["g1"], kp["be1"],
      kp["w3a"], kp["w3b"], kp["b3"])


def _stage2_pallas(xp, masks, kp, H, W):
    B, C, L = xp.shape
    HW = H * W
    nh = kp["wh"].shape[0]
    kernel = functools.partial(_stage2_kernel, W=W)
    return pl.pallas_call(
        kernel,
        out_shape=jax.ShapeDtypeStruct((B, nh, HW), jnp.float32),
        grid=(B,),
        in_specs=[
            pl.BlockSpec((None, C, L), lambda b: (b, 0, 0)),
            pl.BlockSpec(masks.shape, lambda b: (0, 0)),
            pl.BlockSpec(kp["w4t"].shape, lambda b: (0, 0, 0)),
            pl.BlockSpec(kp["b4"].shape, lambda b: (0, 0)),
            pl.BlockSpec(kp["g2"].shape, lambda b: (0, 0)),
            pl.BlockSpec(kp["be2"].shape, lambda b: (0, 0)),
            pl.BlockSpec(kp["wh"].shape, lambda b: (0, 0)),
            pl.BlockSpec(kp["bh"].shape, lambda b: (0, 0)),
            pl.BlockSpec(kp["sigm"].shape, lambda b: (0, 0)),
        ],
        out_specs=pl.BlockSpec((None, nh, HW), lambda b: (b, 0, 0)),
        compiler_params=pltpu.CompilerParams(
            dimension_semantics=("parallel",),
            vmem_limit_bytes=_VMEM_LIMIT),
    )(xp, masks, kp["w4t"], kp["b4"], kp["g2"], kp["be2"],
      kp["wh"], kp["bh"], kp["sigm"])


# ----------------------------- JAX glue (layout / interp) --------------------

def _lin_coords(out_size, in_size):
    # align_corners=True source coordinates (matches F.interpolate)
    if out_size == 1 or in_size == 1:
        z = jnp.zeros((out_size,), jnp.int32)
        return z, z, jnp.zeros((out_size,), jnp.float32)
    src = jnp.arange(out_size, dtype=jnp.float32) * ((in_size - 1) / (out_size - 1))
    i0 = jnp.clip(jnp.floor(src).astype(jnp.int32), 0, in_size - 2)
    i1 = i0 + 1
    t = src - i0.astype(jnp.float32)
    return i0, i1, t


def bilinear_ac_nchw(x, oh, ow):
    # bilinear resize, align_corners=True, NCHW (pure-JAX glue, both paths share it)
    y0, y1, ty = _lin_coords(oh, x.shape[2])
    x0, x1, tx = _lin_coords(ow, x.shape[3])
    top, bot = x[:, :, y0, :], x[:, :, y1, :]
    xv = top + (bot - top) * ty[None, None, :, None]
    l, r = xv[:, :, :, x0], xv[:, :, :, x1]
    return l + (r - l) * tx[None, None, None, :]


def _flat_pad_rows(x, H, W):
    # (B, C, H, W) -> (B, C, H*W + 2*W + 2): flatten spatial, zero-pad W+1 each side
    B, C = x.shape[0], x.shape[1]
    flat = x.reshape(B, C, H * W)
    return jnp.pad(flat, ((0, 0), (0, 0), (W + 1, W + 1)))


def _col_masks(H, W, dtype):
    # lane masks that zero out the column-wrap leakage of the flat 3x3-conv taps
    col = jnp.arange(H * W, dtype=jnp.int32) % W
    m0 = (col != 0).astype(dtype)
    m2 = (col != W - 1).astype(dtype)
    return jnp.stack([m0, m2], axis=0)                         # (2, H*W)


# ----------------------------- parameters ------------------------------------

def init_params(key, in_dim, hidden_dim, seg_dim):
    h = hidden_dim
    ks = jax.random.split(key, 18)

    def kaiming(k, shape, fan_in):
        # kaiming_normal_(w, a=1): std = 1/sqrt(fan_in)
        return jax.random.normal(k, shape, jnp.float32) / jnp.sqrt(float(fan_in))

    def small(k, shape):
        # nonzero biases / affine offsets so the bias-folding path is exercised
        return 0.1 * jax.random.normal(k, shape, jnp.float32)

    p = {}
    p["w1"] = kaiming(ks[0], (4 * in_dim, 2 * h), 4 * in_dim)        # conv1x1
    p["b1"] = small(ks[1], (2 * h,))
    p["w2"] = kaiming(ks[2], (9 * 2 * h, h), 9 * 2 * h)              # conv3x3
    p["b2"] = small(ks[3], (h,))
    p["g1"] = 1.0 + small(ks[4], (h,))                               # InstanceNorm
    p["be1"] = small(ks[5], (h,))
    cin2 = h + seg_dim + 1
    p["w3"] = kaiming(ks[6], (cin2, h), cin2)                        # conv1x1_2
    p["b3"] = small(ks[7], (h,))
    p["w4"] = kaiming(ks[8], (9 * h, h // 2), 9 * h)                 # conv3x3_2
    p["b4"] = small(ks[9], (h // 2,))
    p["g2"] = 1.0 + small(ks[10], (h // 2,))                         # InstanceNorm 2
    p["be2"] = small(ks[11], (h // 2,))
    p["wh"] = jnp.concatenate(
        [kaiming(ks[12 + i], (h // 2, 1), h // 2) for i in range(4)], axis=1)
    p["bh"] = small(ks[16], (4,))
    return p


def prep_kernel_params(p, compute_dtype):
    h = p["g1"].shape[0]
    # fold conv1x1 (w1, b1) into the 3x3 conv: input gets a ones channel, so the
    # per-tap folded weight is ([w1; b1] @ w2[tap])^T and zero padding stays exact.
    w1a = jnp.concatenate([p["w1"], p["b1"][None, :]], axis=0)        # (4*in+1, 2h)
    w2 = p["w2"].reshape(9, 2 * h, h)
    w2f = jnp.einsum("kc,tcd->tdk", w1a, w2,
                     precision=jax.lax.Precision.HIGHEST)              # (9, h, 4*in+1)
    return {
        "w2f": w2f.astype(compute_dtype),
        "b2": p["b2"].reshape(h, 1),
        "g1": p["g1"].reshape(h, 1),
        "be1": p["be1"].reshape(h, 1),
        "w3a": p["w3"][:h].T.astype(compute_dtype),                    # (h, h)
        "w3b": p["w3"][h:].T.astype(compute_dtype),                    # (h, seg+1)
        "b3": p["b3"].reshape(h, 1),
        "w4t": p["w4"].reshape(9, h, h // 2).transpose(0, 2, 1).astype(compute_dtype),
        "b4": p["b4"].reshape(h // 2, 1),
        "g2": p["g2"].reshape(h // 2, 1),
        "be2": p["be2"].reshape(h // 2, 1),
        "wh": p["wh"].T.astype(compute_dtype),                         # (4, h//2)
        "bh": p["bh"].reshape(4, 1),
        "sigm": jnp.array([[1.0], [0.0], [0.0], [1.0]], jnp.float32),
    }


# ----------------------------- forward ---------------------------------------

def grasp_forward(params, feats, seg_f, img_size,
                  compute_dtype=jnp.bfloat16, use_pallas=True):
    h = params["g1"].shape[0]
    B = feats[0].shape[0]
    s = img_size // 4
    kp = prep_kernel_params(params, compute_dtype)

    # multi-scale bilinear resize (align_corners=True) + channel concat, NCHW
    x0 = jnp.concatenate([bilinear_ac_nchw(f, s, s) for f in feats], axis=1)
    # ones channel carries the folded conv1x1 bias through the 3x3 conv
    x0 = jnp.concatenate([x0, jnp.ones((B, 1, s, s), x0.dtype)], axis=1)
    xp0 = _flat_pad_rows(x0, s, s).astype(compute_dtype)
    seg_flat = seg_f.reshape(B, seg_f.shape[1], s * s).astype(compute_dtype)
    masks0 = _col_masks(s, s, compute_dtype)

    if use_pallas:
        x_lo = _stage1_pallas(xp0, seg_flat, masks0, kp, s, h, compute_dtype)
    else:   # pure-JAX mirror of the identical math (for the tight check)
        x_lo = jnp.stack([
            _stage1_math(xp0[b], seg_flat[b], masks0, kp["w2f"], kp["b2"],
                         kp["g1"], kp["be1"], kp["w3a"], kp["w3b"], kp["b3"],
                         W=s, HW=s * s)
            for b in range(B)]).astype(compute_dtype)

    # dropout(p=0.1): identity in eval mode
    x_hi = bilinear_ac_nchw(x_lo.reshape(B, h, s, s), img_size, img_size)
    xp1 = _flat_pad_rows(x_hi, img_size, img_size).astype(compute_dtype)
    masks1 = _col_masks(img_size, img_size, compute_dtype)

    if use_pallas:
        y = _stage2_pallas(xp1, masks1, kp, img_size, img_size)
    else:
        y = jnp.stack([
            _stage2_math(xp1[b], masks1, kp["w4t"], kp["b4"], kp["g2"], kp["be2"],
                         kp["wh"], kp["bh"], kp["sigm"],
                         W=img_size, HW=img_size * img_size)
            for b in range(B)])

    y = y.reshape(B, 4, img_size, img_size)                    # already NCHW
    return y[:, 0:1], y[:, 1:2], y[:, 2:3], y[:, 3:4]          # pos, cos, sin, width


# ------------------- independent unfused fp32 reference ----------------------

def _conv1x1_ref(x, w, b):
    return (jnp.einsum("bchw,cd->bdhw", x, w,
                       precision=jax.lax.Precision.HIGHEST)
            + b[None, :, None, None])


def _conv3x3_ref(x, w9, b):
    B, C, H, W = x.shape
    xp = jnp.pad(x, ((0, 0), (0, 0), (1, 1), (1, 1)))
    acc = None
    for dy in range(3):
        for dx in range(3):
            t = jnp.einsum("bchw,cd->bdhw", xp[:, :, dy:dy + H, dx:dx + W],
                           w9[dy * 3 + dx], precision=jax.lax.Precision.HIGHEST)
            acc = t if acc is None else acc + t
    return acc + b[None, :, None, None]


def _inorm_lrelu_ref(x, g, be):
    mean = jnp.mean(x, axis=(2, 3), keepdims=True)
    var = jnp.mean(jnp.square(x - mean), axis=(2, 3), keepdims=True)
    y = ((x - mean) * jax.lax.rsqrt(var + 1e-5) * g[None, :, None, None]
         + be[None, :, None, None])
    return jnp.where(y >= 0.0, y, 0.01 * y)


def reference_forward(params, feats, seg_f, img_size):
    h = params["g1"].shape[0]
    s = img_size // 4
    x = jnp.concatenate([bilinear_ac_nchw(f, s, s) for f in feats], axis=1)
    x = _conv1x1_ref(x, params["w1"], params["b1"])
    x = _conv3x3_ref(x, params["w2"].reshape(9, 2 * h, h), params["b2"])
    x = _inorm_lrelu_ref(x, params["g1"], params["be1"])
    x = jnp.concatenate([x, seg_f], axis=1)
    x = _conv1x1_ref(x, params["w3"], params["b3"])
    x = bilinear_ac_nchw(x, img_size, img_size)
    x = _conv3x3_ref(x, params["w4"].reshape(9, h, h // 2), params["b4"])
    x = _inorm_lrelu_ref(x, params["g2"], params["be2"])
    y = _conv1x1_ref(x, params["wh"], params["bh"])
    ch = jnp.arange(4)[None, :, None, None]
    y = jnp.where((ch == 0) | (ch == 3), jax.nn.sigmoid(y), y)
    return y[:, 0:1], y[:, 1:2], y[:, 2:3], y[:, 3:4]


# ----------------------------- main -------------------------------------------

if __name__ == "__main__":
    B, in_dim, hidden_dim, seg_dim, img_size = 2, 4, 32, 3, 16
    key = jax.random.PRNGKey(0)
    kpar, k0, k1, k2, k3, kseg = jax.random.split(key, 6)
    params = init_params(kpar, in_dim, hidden_dim, seg_dim)

    feats = [
        jax.random.normal(k0, (B, in_dim, 16, 16), jnp.float32),
        jax.random.normal(k1, (B, in_dim, 8, 8), jnp.float32),
        jax.random.normal(k2, (B, in_dim, 4, 4), jnp.float32),
        jax.random.normal(k3, (B, in_dim, 2, 2), jnp.float32),
    ]
    seg_f = jax.random.normal(
        kseg, (B, seg_dim + 1, img_size // 4, img_size // 4), jnp.float32)

    # Pallas path (bf16 matmul operands / inter-stage activations, fp32 stats)
    outs = grasp_forward(params, feats, seg_f, img_size,
                         compute_dtype=jnp.bfloat16, use_pallas=True)
    outs = jax.block_until_ready(outs)

    # mirror: identical folded/flat/masked math in plain JAX -> tight check
    mirror = grasp_forward(params, feats, seg_f, img_size,
                           compute_dtype=jnp.bfloat16, use_pallas=False)
    mirror = jax.block_until_ready(mirror)

    # independent unfused fp32 reference (original op-by-op formulation) -> loose
    # check that validates the conv1x1->conv3x3 fold, flat row padding + masks, fusion
    refs = reference_forward(params, feats, seg_f, img_size)
    refs = jax.block_until_ready(refs)

    for o, m, r in zip(outs, mirror, refs):
        assert o.shape == (B, 1, img_size, img_size), o.shape
        assert bool(jnp.all(jnp.isfinite(o)))
        assert bool(jnp.allclose(o, m, atol=2e-3, rtol=2e-3)), \
            float(jnp.max(jnp.abs(o - m)))
        assert bool(jnp.allclose(o, r, atol=1e-1, rtol=5e-2)), \
            float(jnp.max(jnp.abs(o - r)))

    print("KERNEL_OK")
</pallas_src>

<mosaic_0001>
module attributes {stable_mosaic.version = 11 : i64} {
  func.func @_stage1_kernel(%arg0: i32, %arg1: memref<1x17x26xbf16, #tpu.memory_space<vmem>>, %arg2: memref<1x4x16xbf16, #tpu.memory_space<vmem>>, %arg3: memref<2x16xbf16, #tpu.memory_space<vmem>>, %arg4: memref<9x32x17xbf16, #tpu.memory_space<vmem>>, %arg5: memref<32x1xf32, #tpu.memory_space<vmem>>, %arg6: memref<32x1xf32, #tpu.memory_space<vmem>>, %arg7: memref<32x1xf32, #tpu.memory_space<vmem>>, %arg8: memref<32x32xbf16, #tpu.memory_space<vmem>>, %arg9: memref<32x4xbf16, #tpu.memory_space<vmem>>, %arg10: memref<32x1xf32, #tpu.memory_space<vmem>>, %arg11: memref<1x32x16xbf16, #tpu.memory_space<vmem>>) attributes {dimension_semantics = [#tpu.dimension_semantics<parallel>], iteration_bounds = array<i64: 2>, scalar_prefetch = 0 : i64, scratch_operands = 0 : i64, tpu.core_type = #tpu.core_type<tc>, window_params = [{transform_indices = @transform_0, window_bounds = array<i64: 1, 17, 26>}, {transform_indices = @transform_1, window_bounds = array<i64: 1, 4, 16>}, {pipeline_mode = #tpu.pipeline_mode<synchronous>, transform_indices = @transform_2, window_bounds = array<i64: 2, 16>}, {pipeline_mode = #tpu.pipeline_mode<synchronous>, transform_indices = @transform_3, window_bounds = array<i64: 9, 32, 17>}, {pipeline_mode = #tpu.pipeline_mode<synchronous>, transform_indices = @transform_4, window_bounds = array<i64: 32, 1>}, {pipeline_mode = #tpu.pipeline_mode<synchronous>, transform_indices = @transform_5, window_bounds = array<i64: 32, 1>}, {pipeline_mode = #tpu.pipeline_mode<synchronous>, transform_indices = @transform_6, window_bounds = array<i64: 32, 1>}, {pipeline_mode = #tpu.pipeline_mode<synchronous>, transform_indices = @transform_7, window_bounds = array<i64: 32, 32>}, {pipeline_mode = #tpu.pipeline_mode<synchronous>, transform_indices = @transform_8, window_bounds = array<i64: 32, 4>}, {pipeline_mode = #tpu.pipeline_mode<synchronous>, transform_indices = @transform_9, window_bounds = array<i64: 32, 1>}, {transform_indices = @transform_10, window_bounds = array<i64: 1, 32, 16>}]} {
    %c0 = arith.constant 0 : index
    %c0_0 = arith.constant 0 : index
    %c0_1 = arith.constant 0 : index
    %0 = vector.load %arg2[%c0, %c0_0, %c0_1] : memref<1x4x16xbf16, #tpu.memory_space<vmem>>, vector<1x4x16xbf16>
    %1 = vector.shape_cast %0 : vector<1x4x16xbf16> to vector<4x16xbf16>
    %c0_2 = arith.constant 0 : index
    %c0_3 = arith.constant 0 : index
    %2 = vector.load %arg5[%c0_2, %c0_3] : memref<32x1xf32, #tpu.memory_space<vmem>>, vector<32x1xf32>
    %c0_4 = arith.constant 0 : index
    %c0_5 = arith.constant 0 : index
    %3 = vector.load %arg6[%c0_4, %c0_5] : memref<32x1xf32, #tpu.memory_space<vmem>>, vector<32x1xf32>
    %c0_6 = arith.constant 0 : index
    %c0_7 = arith.constant 0 : index
    %4 = vector.load %arg7[%c0_6, %c0_7] : memref<32x1xf32, #tpu.memory_space<vmem>>, vector<32x1xf32>
    %c0_8 = arith.constant 0 : index
    %c0_9 = arith.constant 0 : index
    %5 = vector.load %arg8[%c0_8, %c0_9] : memref<32x32xbf16, #tpu.memory_space<vmem>>, vector<32x32xbf16>
    %c0_10 = arith.constant 0 : index
    %c0_11 = arith.constant 0 : index
    %6 = vector.load %arg9[%c0_10, %c0_11] : memref<32x4xbf16, #tpu.memory_space<vmem>>, vector<32x4xbf16>
    %c0_12 = arith.constant 0 : index
    %c0_13 = arith.constant 0 : index
    %7 = vector.load %arg10[%c0_12, %c0_13] : memref<32x1xf32, #tpu.memory_space<vmem>>, vector<32x1xf32>
    %c0_14 = arith.constant 0 : index
    %c0_15 = arith.constant 0 : index
    %8 = vector.load %arg3[%c0_14, %c0_15] : memref<2x16xbf16, #tpu.memory_space<vmem>>, vector<1x16xbf16>
    %c1 = arith.constant 1 : index
    %c0_16 = arith.constant 0 : index
    %9 = vector.load %arg3[%c1, %c0_16] : memref<2x16xbf16, #tpu.memory_space<vmem>>, vector<1x16xbf16>
    %c0_17 = arith.constant 0 : index
    %c0_18 = arith.constant 0 : index
    %c0_19 = arith.constant 0 : index
    %10 = vector.load %arg1[%c0_17, %c0_18, %c0_19] : memref<1x17x26xbf16, #tpu.memory_space<vmem>>, vector<1x17x16xbf16>
    %11 = vector.shape_cast %10 : vector<1x17x16xbf16> to vector<17x16xbf16>
    %12 = vector.broadcast %8 : vector<1x16xbf16> to vector<17x16xbf16>
    %13 = arith.mulf %11, %12 : vector<17x16xbf16>
    %c0_20 = arith.constant 0 : index
    %c0_21 = arith.constant 0 : index
    %c0_22 = arith.constant 0 : index
    %14 = vector.load %arg4[%c0_20, %c0_21, %c0_22] : memref<9x32x17xbf16, #tpu.memory_space<vmem>>, vector<1x32x17xbf16>
    %15 = vector.shape_cast %14 : vector<1x32x17xbf16> to vector<32x17xbf16>
    %cst = arith.constant dense<0.000000e+00> : vector<32x16xf32>
    %16 = tpu.matmul %15, %13, %cst {dimension_numbers = #tpu.dot_dimension_numbers<[1], [0], [0], [1], [0, 0, 1, 1], [], []>} : vector<32x17xbf16>, vector<17x16xbf16>, vector<32x16xf32> -> vector<32x16xf32>
    %c0_23 = arith.constant 0 : index
    %c0_24 = arith.constant 0 : index
    %c1_25 = arith.constant 1 : index
    %17 = vector.load %arg1[%c0_23, %c0_24, %c1_25] : memref<1x17x26xbf16, #tpu.memory_space<vmem>>, vector<1x17x16xbf16>
    %18 = vector.shape_cast %17 : vector<1x17x16xbf16> to vector<17x16xbf16>
    %c1_26 = arith.constant 1 : index
    %c0_27 = arith.constant 0 : index
    %c0_28 = arith.constant 0 : index
    %19 = vector.load %arg4[%c1_26, %c0_27, %c0_28] : memref<9x32x17xbf16, #tpu.memory_space<vmem>>, vector<1x32x17xbf16>
    %20 = vector.shape_cast %19 : vector<1x32x17xbf16> to vector<32x17xbf16>
    %cst_29 = arith.constant dense<0.000000e+00> : vector<32x16xf32>
    %21 = tpu.matmul %20, %18, %cst_29 {dimension_numbers = #tpu.dot_dimension_numbers<[1], [0], [0], [1], [0, 0, 1, 1], [], []>} : vector<32x17xbf16>, vector<17x16xbf16>, vector<32x16xf32> -> vector<32x16xf32>
    %22 = arith.addf %16, %21 : vector<32x16xf32>
    %c0_30 = arith.constant 0 : index
    %c0_31 = arith.constant 0 : index
    %c2 = arith.constant 2 : index
    %23 = vector.load %arg1[%c0_30, %c0_31, %c2] : memref<1x17x26xbf16, #tpu.memory_space<vmem>>, vector<1x17x16xbf16>
    %24 = vector.shape_cast %23 : vector<1x17x16xbf16> to vector<17x16xbf16>
    %25 = vector.broadcast %9 : vector<1x16xbf16> to vector<17x16xbf16>
    %26 = arith.mulf %24, %25 : vector<17x16xbf16>
    %c2_32 = arith.constant 2 : index
    %c0_33 = arith.constant 0 : index
    %c0_34 = arith.constant 0 : index
    %27 = vector.load %arg4[%c2_32, %c0_33, %c0_34] : memref<9x32x17xbf16, #tpu.memory_space<vmem>>, vector<1x32x17xbf16>
    %28 = vector.shape_cast %27 : vector<1x32x17xbf16> to vector<32x17xbf16>
    %cst_35 = arith.constant dense<0.000000e+00> : vector<32x16xf32>
    %29 = tpu.matmul %28, %26, %cst_35 {dimension_numbers = #tpu.dot_dimension_numbers<[1], [0], [0], [1], [0, 0, 1, 1], [], []>} : vector<32x17xbf16>, vector<17x16xbf16>, vector<32x16xf32> -> vector<32x16xf32>
    %30 = arith.addf %22, %29 : vector<32x16xf32>
    %c0_36 = arith.constant 0 : index
    %c0_37 = arith.constant 0 : index
    %c4 = arith.constant 4 : index
    %31 = vector.load %arg1[%c0_36, %c0_37, %c4] : memref<1x17x26xbf16, #tpu.memory_space<vmem>>, vector<1x17x16xbf16>
    %32 = vector.shape_cast %31 : vector<1x17x16xbf16> to vector<17x16xbf16>
    %33 = vector.broadcast %8 : vector<1x16xbf16> to vector<17x16xbf16>
    %34 = arith.mulf %32, %33 : vector<17x16xbf16>
    %c3 = arith.constant 3 : index
    %c0_38 = arith.constant 0 : index
    %c0_39 = arith.constant 0 : index
    %35 = vector.load %arg4[%c3, %c0_38, %c0_39] : memref<9x32x17xbf16, #tpu.memory_space<vmem>>, vector<1x32x17xbf16>
    %36 = vector.shape_cast %35 : vector<1x32x17xbf16> to vector<32x17xbf16>
    %cst_40 = arith.constant dense<0.000000e+00> : vector<32x16xf32>
    %37 = tpu.matmul %36, %34, %cst_40 {dimension_numbers = #tpu.dot_dimension_numbers<[1], [0], [0], [1], [0, 0, 1, 1], [], []>} : vector<32x17xbf16>, vector<17x16xbf16>, vector<32x16xf32> -> vector<32x16xf32>
    %38 = arith.addf %30, %37 : vector<32x16xf32>
    %c0_41 = arith.constant 0 : index
    %c0_42 = arith.constant 0 : index
    %c5 = arith.constant 5 : index
    %39 = vector.load %arg1[%c0_41, %c0_42, %c5] : memref<1x17x26xbf16, #tpu.memory_space<vmem>>, vector<1x17x16xbf16>
    %40 = vector.shape_cast %39 : vector<1x17x16xbf16> to vector<17x16xbf16>
    %c4_43 = arith.constant 4 : index
    %c0_44 = arith.constant 0 : index
    %c0_45 = arith.constant 0 : index
    %41 = vector.load %arg4[%c4_43, %c0_44, %c0_45] : memref<9x32x17xbf16, #tpu.memory_space<vmem>>, vector<1x32x17xbf16>
    %42 = vector.shape_cast %41 : vector<1x32x17xbf16> to vector<32x17xbf16>
    %cst_46 = arith.constant dense<0.000000e+00> : vector<32x16xf32>
    %43 = tpu.matmul %42, %40, %cst_46 {dimension_numbers = #tpu.dot_dimension_numbers<[1], [0], [0], [1], [0, 0, 1, 1], [], []>} : vector<32x17xbf16>, vector<17x16xbf16>, vector<32x16xf32> -> vector<32x16xf32>
    %44 = arith.addf %38, %43 : vector<32x16xf32>
    %c0_47 = arith.constant 0 : index
    %c0_48 = arith.constant 0 : index
    %c6 = arith.constant 6 : index
    %45 = vector.load %arg1[%c0_47, %c0_48, %c6] : memref<1x17x26xbf16, #tpu.memory_space<vmem>>, vector<1x17x16xbf16>
    %46 = vector.shape_cast %45 : vector<1x17x16xbf16> to vector<17x16xbf16>
    %47 = vector.broadcast %9 : vector<1x16xbf16> to vector<17x16xbf16>
    %48 = arith.mulf %46, %47 : vector<17x16xbf16>
    %c5_49 = arith.constant 5 : index
    %c0_50 = arith.constant 0 : index
    %c0_51 = arith.constant 0 : index
    %49 = vector.load %arg4[%c5_49, %c0_50, %c0_51] : memref<9x32x17xbf16, #tpu.memory_space<vmem>>, vector<1x32x17xbf16>
    %50 = vector.shape_cast %49 : vector<1x32x17xbf16> to vector<32x17xbf16>
    %cst_52 = arith.constant dense<0.000000e+00> : vector<32x16xf32>
    %51 = tpu.matmul %50, %48, %cst_52 {dimension_numbers = #tpu.dot_dimension_numbers<[1], [0], [0], [1], [0, 0, 1, 1], [], []>} : vector<32x17xbf16>, vector<17x16xbf16>, vector<32x16xf32> -> vector<32x16xf32>
    %52 = arith.addf %44, %51 : vector<32x16xf32>
    %c0_53 = arith.constant 0 : index
    %c0_54 = arith.constant 0 : index
    %c8 = arith.constant 8 : index
    %53 = vector.load %arg1[%c0_53, %c0_54, %c8] : memref<1x17x26xbf16, #tpu.memory_space<vmem>>, vector<1x17x16xbf16>
    %54 = vector.shape_cast %53 : vector<1x17x16xbf16> to vector<17x16xbf16>
    %55 = vector.broadcast %8 : vector<1x16xbf16> to vector<17x16xbf16>
    %56 = arith.mulf %54, %55 : vector<17x16xbf16>
    %c6_55 = arith.constant 6 : index
    %c0_56 = arith.constant 0 : index
    %c0_57 = arith.constant 0 : index
    %57 = vector.load %arg4[%c6_55, %c0_56, %c0_57] : memref<9x32x17xbf16, #tpu.memory_space<vmem>>, vector<1x32x17xbf16>
    %58 = vector.shape_cast %57 : vector<1x32x17xbf16> to vector<32x17xbf16>
    %cst_58 = arith.constant dense<0.000000e+00> : vector<32x16xf32>
    %59 = tpu.matmul %58, %56, %cst_58 {dimension_numbers = #tpu.dot_dimension_numbers<[1], [0], [0], [1], [0, 0, 1, 1], [], []>} : vector<32x17xbf16>, vector<17x16xbf16>, vector<32x16xf32> -> vector<32x16xf32>
    %60 = arith.addf %52, %59 : vector<32x16xf32>
    %c0_59 = arith.constant 0 : index
    %c0_60 = arith.constant 0 : index
    %c9 = arith.constant 9 : index
    %61 = vector.load %arg1[%c0_59, %c0_60, %c9] : memref<1x17x26xbf16, #tpu.memory_space<vmem>>, vector<1x17x16xbf16>
    %62 = vector.shape_cast %61 : vector<1x17x16xbf16> to vector<17x16xbf16>
    %c7 = arith.constant 7 : index
    %c0_61 = arith.constant 0 : index
    %c0_62 = arith.constant 0 : index
    %63 = vector.load %arg4[%c7, %c0_61, %c0_62] : memref<9x32x17xbf16, #tpu.memory_space<vmem>>, vector<1x32x17xbf16>
    %64 = vector.shape_cast %63 : vector<1x32x17xbf16> to vector<32x17xbf16>
    %cst_63 = arith.constant dense<0.000000e+00> : vector<32x16xf32>
    %65 = tpu.matmul %64, %62, %cst_63 {dimension_numbers = #tpu.dot_dimension_numbers<[1], [0], [0], [1], [0, 0, 1, 1], [], []>} : vector<32x17xbf16>, vector<17x16xbf16>, vector<32x16xf32> -> vector<32x16xf32>
    %66 = arith.addf %60, %65 : vector<32x16xf32>
    %c0_64 = arith.constant 0 : index
    %c0_65 = arith.constant 0 : index
    %c10 = arith.constant 10 : index
    %67 = vector.load %arg1[%c0_64, %c0_65, %c10] : memref<1x17x26xbf16, #tpu.memory_space<vmem>>, vector<1x17x16xbf16>
    %68 = vector.shape_cast %67 : vector<1x17x16xbf16> to vector<17x16xbf16>
    %69 = vector.broadcast %9 : vector<1x16xbf16> to vector<17x16xbf16>
    %70 = arith.mulf %68, %69 : vector<17x16xbf16>
    %c8_66 = arith.constant 8 : index
    %c0_67 = arith.constant 0 : index
    %c0_68 = arith.constant 0 : index
    %71 = vector.load %arg4[%c8_66, %c0_67, %c0_68] : memref<9x32x17xbf16, #tpu.memory_space<vmem>>, vector<1x32x17xbf16>
    %72 = vector.shape_cast %71 : vector<1x32x17xbf16> to vector<32x17xbf16>
    %cst_69 = arith.constant dense<0.000000e+00> : vector<32x16xf32>
    %73 = tpu.matmul %72, %70, %cst_69 {dimension_numbers = #tpu.dot_dimension_numbers<[1], [0], [0], [1], [0, 0, 1, 1], [], []>} : vector<32x17xbf16>, vector<17x16xbf16>, vector<32x16xf32> -> vector<32x16xf32>
    %74 = arith.addf %66, %73 : vector<32x16xf32>
    %75 = vector.broadcast %2 : vector<32x1xf32> to vector<32x16xf32>
    %76 = arith.addf %74, %75 : vector<32x16xf32>
    %cst_70 = arith.constant dense<0.000000e+00> : vector<32xf32>
    %77 = vector.multi_reduction <add>, %76, %cst_70 [1] : vector<32x16xf32> to vector<32xf32>
    %78 = vector.shape_cast %77 : vector<32xf32> to vector<32x1xf32>
    %cst_71 = arith.constant 1.600000e+01 : f32
    %79 = vector.broadcast %cst_71 : f32 to vector<32x1xf32>
    %80 = arith.divf %78, %79 : vector<32x1xf32>
    %81 = vector.broadcast %80 : vector<32x1xf32> to vector<32x16xf32>
    %82 = arith.subf %76, %81 : vector<32x16xf32>
    %83 = arith.mulf %82, %82 : vector<32x16xf32>
    %cst_72 = arith.constant dense<0.000000e+00> : vector<32xf32>
    %84 = vector.multi_reduction <add>, %83, %cst_72 [1] : vector<32x16xf32> to vector<32xf32>
    %85 = vector.shape_cast %84 : vector<32xf32> to vector<32x1xf32>
    %cst_73 = arith.constant 1.600000e+01 : f32
    %86 = vector.broadcast %cst_73 : f32 to vector<32x1xf32>
    %87 = arith.divf %85, %86 : vector<32x1xf32>
    %88 = vector.broadcast %80 : vector<32x1xf32> to vector<32x16xf32>
    %89 = arith.subf %76, %88 : vector<32x16xf32>
    %cst_74 = arith.constant 9.99999974E-6 : f32
    %90 = vector.broadcast %cst_74 : f32 to vector<32x1xf32>
    %91 = arith.addf %87, %90 : vector<32x1xf32>
    %92 = math.rsqrt %91 : vector<32x1xf32>
    %93 = vector.broadcast %92 : vector<32x1xf32> to vector<32x16xf32>
    %94 = arith.mulf %89, %93 : vector<32x16xf32>
    %95 = vector.broadcast %3 : vector<32x1xf32> to vector<32x16xf32>
    %96 = arith.mulf %94, %95 : vector<32x16xf32>
    %97 = vector.broadcast %4 : vector<32x1xf32> to vector<32x16xf32>
    %98 = arith.addf %96, %97 : vector<32x16xf32>
    %cst_75 = arith.constant 0.000000e+00 : f32
    %99 = vector.broadcast %cst_75 : f32 to vector<32x16xf32>
    %100 = arith.cmpf oge, %98, %99 : vector<32x16xf32>
    %cst_76 = arith.constant 0.00999999977 : f32
    %101 = vector.broadcast %cst_76 : f32 to vector<32x16xf32>
    %102 = arith.mulf %101, %98 : vector<32x16xf32>
    %103 = arith.select %100, %98, %102 : vector<32x16xi1>, vector<32x16xf32>
    %104 = arith.truncf %103 : vector<32x16xf32> to vector<32x16xbf16>
    %cst_77 = arith.constant dense<0.000000e+00> : vector<32x16xf32>
    %105 = tpu.matmul %5, %104, %cst_77 {dimension_numbers = #tpu.dot_dimension_numbers<[1], [0], [0], [1], [0, 0, 1, 1], [], []>} : vector<32x32xbf16>, vector<32x16xbf16>, vector<32x16xf32> -> vector<32x16xf32>
    %cst_78 = arith.constant dense<0.000000e+00> : vector<32x16xf32>
    %106 = tpu.matmul %6, %1, %cst_78 {dimension_numbers = #tpu.dot_dimension_numbers<[1], [0], [0], [1], [0, 0, 1, 1], [], []>} : vector<32x4xbf16>, vector<4x16xbf16>, vector<32x16xf32> -> vector<32x16xf32>
    %107 = arith.addf %105, %106 : vector<32x16xf32>
    %108 = vector.broadcast %7 : vector<32x1xf32> to vector<32x16xf32>
    %109 = arith.addf %107, %108 : vector<32x16xf32>
    %110 = arith.truncf %109 : vector<32x16xf32> to vector<32x16xbf16>
    %c0_79 = arith.constant 0 : index
    %c0_80 = arith.constant 0 : index
    %c0_81 = arith.constant 0 : index
    %111 = vector.load %arg11[%c0_79, %c0_80, %c0_81] : memref<1x32x16xbf16, #tpu.memory_space<vmem>>, vector<1x32x16xbf16>
    %112 = vector.shape_cast %111 : vector<1x32x16xbf16> to vector<32x16xbf16>
    %113 = vector.shape_cast %110 : vector<32x16xbf16> to vector<1x32x16xbf16>
    tpu.vector_store %arg11[%c0_79, %c0_80, %c0_81], %113 {strides = array<i32>} : memref<1x32x16xbf16, #tpu.memory_space<vmem>>, vector<1x32x16xbf16>,
    return
  }
  func.func @transform_0(%arg0: i32) -> (i32, i32, i32) {
    %c0_i32 = arith.constant 0 : i32
    %c0_i32_0 = arith.constant 0 : i32
    %c0_i32_1 = arith.constant 0 : i32
    return %arg0, %c0_i32, %c0_i32_0 : i32, i32, i32
  }
  func.func @transform_1(%arg0: i32) -> (i32, i32, i32) {
    %c0_i32 = arith.constant 0 : i32
    %c0_i32_0 = arith.constant 0 : i32
    %c0_i32_1 = arith.constant 0 : i32
    return %arg0, %c0_i32, %c0_i32_0 : i32, i32, i32
  }
  func.func @transform_2(%arg0: i32) -> (i32, i32) {
    %c0_i32 = arith.constant 0 : i32
    %c0_i32_0 = arith.constant 0 : i32
    %c0_i32_1 = arith.constant 0 : i32
    return %c0_i32, %c0_i32_0 : i32, i32
  }
  func.func @transform_3(%arg0: i32) -> (i32, i32, i32) {
    %c0_i32 = arith.constant 0 : i32
    %c0_i32_0 = arith.constant 0 : i32
    %c0_i32_1 = arith.constant 0 : i32
    %c0_i32_2 = arith.constant 0 : i32
    return %c0_i32, %c0_i32_0, %c0_i32_1 : i32, i32, i32
  }
  func.func @transform_4(%arg0: i32) -> (i32, i32) {
    %c0_i32 = arith.constant 0 : i32
    %c0_i32_0 = arith.constant 0 : i32
    %c0_i32_1 = arith.constant 0 : i32
    return %c0_i32, %c0_i32_0 : i32, i32
  }
  func.func @transform_5(%arg0: i32) -> (i32, i32) {
    %c0_i32 = arith.constant 0 : i32
    %c0_i32_0 = arith.constant 0 : i32
    %c0_i32_1 = arith.constant 0 : i32
    return %c0_i32, %c0_i32_0 : i32, i32
  }
  func.func @transform_6(%arg0: i32) -> (i32, i32) {
    %c0_i32 = arith.constant 0 : i32
    %c0_i32_0 = arith.constant 0 : i32
    %c0_i32_1 = arith.constant 0 : i32
    return %c0_i32, %c0_i32_0 : i32, i32
  }
  func.func @transform_7(%arg0: i32) -> (i32, i32) {
    %c0_i32 = arith.constant 0 : i32
    %c0_i32_0 = arith.constant 0 : i32
    %c0_i32_1 = arith.constant 0 : i32
    return %c0_i32, %c0_i32_0 : i32, i32
  }
  func.func @transform_8(%arg0: i32) -> (i32, i32) {
    %c0_i32 = arith.constant 0 : i32
    %c0_i32_0 = arith.constant 0 : i32
    %c0_i32_1 = arith.constant 0 : i32
    return %c0_i32, %c0_i32_0 : i32, i32
  }
  func.func @transform_9(%arg0: i32) -> (i32, i32) {
    %c0_i32 = arith.constant 0 : i32
    %c0_i32_0 = arith.constant 0 : i32
    %c0_i32_1 = arith.constant 0 : i32
    return %c0_i32, %c0_i32_0 : i32, i32
  }
  func.func @transform_10(%arg0: i32) -> (i32, i32, i32) {
    %c0_i32 = arith.constant 0 : i32
    %c0_i32_0 = arith.constant 0 : i32
    %c0_i32_1 = arith.constant 0 : i32
    return %arg0, %c0_i32, %c0_i32_0 : i32, i32, i32
  }
}

</mosaic_0001>

<llo_original>
// kernel: tpu_custom_call.1
$region0: #{tpu_custom_call.1}
  #allocation0 [shape = 'u32[]', space=smem, size = 0x4, offset = 0x4, fixed_abs, tag = 'smem constant byte address 0x4 - core index']
  #allocation1 [shape = 'u32[144,128]{1,0:T(1,128)}', space=vmem, size = 0x12000, scoped, tag = 'internal scratch']
  %s0 = inlined_call_operand.vmem [shape: bf16[2,17,26], index: 0, kind: input, shape index: {}]
  %s1 = inlined_call_operand.vmem [shape: bf16[2,4,16], index: 1, kind: input, shape index: {}]
  %s2 = inlined_call_operand.vmem [shape: bf16[2,16], index: 2, kind: input, shape index: {}]
  %s3 = inlined_call_operand.vmem [shape: bf16[9,32,17], index: 3, kind: input, shape index: {}]
  %s4 = inlined_call_operand.vmem [shape: f32[32,1], index: 4, kind: input, shape index: {}]
  %s5 = inlined_call_operand.vmem [shape: f32[32,1], index: 5, kind: input, shape index: {}]
  %s6 = inlined_call_operand.vmem [shape: f32[32,1], index: 6, kind: input, shape index: {}]
  %s7 = inlined_call_operand.vmem [shape: bf16[32,32], index: 7, kind: input, shape index: {}]
  %s8 = inlined_call_operand.vmem [shape: bf16[32,4], index: 8, kind: input, shape index: {}]
  %s9 = inlined_call_operand.vmem [shape: f32[32,1], index: 9, kind: input, shape index: {}]
  %s10 = inlined_call_operand.vmem [shape: bf16[2,32,16], index: 10, kind: output, shape index: {}]
  %s11 = sld [smem:[#allocation0]]
  $region73: #{tpu_custom_call.1} parent=0
    _
  %s13 = ssub.s32 1, %s11
  %s14 = scalar_select 0, %s13, %s11
  loop: start=0, step=1, limit=4
  $region2: #{tpu_custom_call.1} parent=0 // loop_pre_header
    _
  $region3: #{tpu_custom_call.1} parent=0 // loop_header
    %s16 = sphi 0, %s20
    %p17 = scmp.ge.s32.totalorder %s16, 4
    %s26 = sphi 0, %s28
    %s29 = sphi 0, %s26
    %s30 = sphi 0, %s29
    %s46 = sphi 0, %s30
    %s52 = sphi 0, %s54
    %s55 = sphi 0, %s52
    %s56 = sphi 0, %s55
    %s72 = sphi 0, %s56
    %s76 = sphi 0, %s76
    %s78 = sphi 0, %s76
    %s79 = sphi 0, %s78
    %s93 = sphi 0, %s79
    %s97 = sphi 0, %s97
    %s99 = sphi 0, %s97
    %s100 = sphi 0, %s99
    %s114 = sphi 0, %s100
    %s118 = sphi 0, %s118
    %s120 = sphi 0, %s118
    %s121 = sphi 0, %s120
    %s135 = sphi 0, %s121
    %s139 = sphi 0, %s139
    %s141 = sphi 0, %s139
    %s142 = sphi 0, %s141
    %s156 = sphi 0, %s142
    %s160 = sphi 0, %s160
    %s162 = sphi 0, %s160
    %s163 = sphi 0, %s162
    %s177 = sphi 0, %s163
    %s181 = sphi 0, %s181
    %s183 = sphi 0, %s181
    %s184 = sphi 0, %s183
    %s198 = sphi 0, %s184
    %s202 = sphi 0, %s202
    %s204 = sphi 0, %s202
    %s205 = sphi 0, %s204
    %s219 = sphi 0, %s205
    %s223 = sphi 0, %s223
    %s225 = sphi 0, %s223
    %s226 = sphi 0, %s225
    %s240 = sphi 0, %s226
    %s246 = sphi 0, %s248
    %s249 = sphi 0, %s246
    %s250 = sphi 0, %s249
    %s266 = sphi 0, %s250
  $region4: #{tpu_custom_call.1} parent=0 // loop_header_branch
    %19 = sbr.rel (%p17) target = $region8
  $region5: #{tpu_custom_call.1} parent=0 // loop_body
    %s21 = ssub.s32 %s16, 1
    %s22 = ssub.s32 %s16, 2
    %s23 = sadd.s32 %s16, 1
    %s24 = ssub.s32 %s16, %s23
    %p25 = scmp.eq.s32.totalorder %s24, 0
    %s27 = sadd.s32 %s26, 1
    %s28 = scalar_select %p25, %s26, %s27
    %p31 = pneg %p25
    %p32 = scmp.eq.s32.totalorder %s16, 1
    %p33 = por %p31, %p32
    %p34 = scmp.ne.s32.totalorder %s26, %s29
    %p35 = scmp.eq.s32.totalorder %s16, 0
    %p36 = por %p34, %p35
    %p37 = scmp.ne.s32.totalorder %s26, %s29
    %p38 = scmp.eq.s32.totalorder %s21, 1
    %p39 = por %p37, %p38
    %p40 = scmp.ne.s32.totalorder %s29, %s30
    %p41 = scmp.eq.s32.totalorder %s21, 0
    %p42 = por %p40, %p41
    %p43 = scmp.ne.s32.totalorder %s29, %s30
    %p44 = scmp.eq.s32.totalorder %s22, 1
    %p45 = por %p43, %p44
    %p47 = scmp.ne.s32.totalorder %s30, %s46
    %p48 = scmp.eq.s32.totalorder %s22, 0
    %p49 = por %p47, %p48
    %s50 = ssub.s32 %s16, %s23
    %p51 = scmp.eq.s32.totalorder %s50, 0
    %s53 = sadd.s32 %s52, 1
    %s54 = scalar_select %p51, %s52, %s53
    %p57 = pneg %p51
    %p58 = scmp.eq.s32.totalorder %s16, 1
    %p59 = por %p57, %p58
    %p60 = scmp.ne.s32.totalorder %s52, %s55
    %p61 = scmp.eq.s32.totalorder %s16, 0
    %p62 = por %p60, %p61
    %p63 = scmp.ne.s32.totalorder %s52, %s55
    %p64 = scmp.eq.s32.totalorder %s21, 1
    %p65 = por %p63, %p64
    %p66 = scmp.ne.s32.totalorder %s55, %s56
    %p67 = scmp.eq.s32.totalorder %s21, 0
    %p68 = por %p66, %p67
    %p69 = scmp.ne.s32.totalorder %s55, %s56
    %p70 = scmp.eq.s32.totalorder %s22, 1
    %p71 = por %p69, %p70
    %p73 = scmp.ne.s32.totalorder %s56, %s72
    %p74 = scmp.eq.s32.totalorder %s22, 0
    %p75 = por %p73, %p74
    %s77 = sadd.s32 %s76, 1
    %p80 = scmp.eq.s32.totalorder %s16, 1
    %p81 = scmp.ne.s32.totalorder %s76, %s78
    %p82 = scmp.eq.s32.totalorder %s16, 0
    %p83 = por %p81, %p82
    %p84 = scmp.ne.s32.totalorder %s76, %s78
    %p85 = scmp.eq.s32.totalorder %s21, 1
    %p86 = por %p84, %p85
    %p87 = scmp.ne.s32.totalorder %s78, %s79
    %p88 = scmp.eq.s32.totalorder %s21, 0
    %p89 = por %p87, %p88
    %p90 = scmp.ne.s32.totalorder %s78, %s79
    %p91 = scmp.eq.s32.totalorder %s22, 1
    %p92 = por %p90, %p91
    %p94 = scmp.ne.s32.totalorder %s79, %s93
    %p95 = scmp.eq.s32.totalorder %s22, 0
    %p96 = por %p94, %p95
    %s98 = sadd.s32 %s97, 1
    %p101 = scmp.eq.s32.totalorder %s16, 1
    %p102 = scmp.ne.s32.totalorder %s97, %s99
    %p103 = scmp.eq.s32.totalorder %s16, 0
    %p104 = por %p102, %p103
    %p105 = scmp.ne.s32.totalorder %s97, %s99
    %p106 = scmp.eq.s32.totalorder %s21, 1
    %p107 = por %p105, %p106
    %p108 = scmp.ne.s32.totalorder %s99, %s100
    %p109 = scmp.eq.s32.totalorder %s21, 0
    %p110 = por %p108, %p109
    %p111 = scmp.ne.s32.totalorder %s99, %s100
    %p112 = scmp.eq.s32.totalorder %s22, 1
    %p113 = por %p111, %p112
    %p115 = scmp.ne.s32.totalorder %s100, %s114
    %p116 = scmp.eq.s32.totalorder %s22, 0
    %p117 = por %p115, %p116
    %s119 = sadd.s32 %s118, 1
    %p122 = scmp.eq.s32.totalorder %s16, 1
    %p123 = scmp.ne.s32.totalorder %s118, %s120
    %p124 = scmp.eq.s32.totalorder %s16, 0
    %p125 = por %p123, %p124
    %p126 = scmp.ne.s32.totalorder %s118, %s120
    %p127 = scmp.eq.s32.totalorder %s21, 1
    %p128 = por %p126, %p127
    %p129 = scmp.ne.s32.totalorder %s120, %s121
    %p130 = scmp.eq.s32.totalorder %s21, 0
    %p131 = por %p129, %p130
    %p132 = scmp.ne.s32.totalorder %s120, %s121
    %p133 = scmp.eq.s32.totalorder %s22, 1
    %p134 = por %p132, %p133
    %p136 = scmp.ne.s32.totalorder %s121, %s135
    %p137 = scmp.eq.s32.totalorder %s22, 0
    %p138 = por %p136, %p137
    %s140 = sadd.s32 %s139, 1
    %p143 = scmp.eq.s32.totalorder %s16, 1
    %p144 = scmp.ne.s32.totalorder %s139, %s141
    %p145 = scmp.eq.s32.totalorder %s16, 0
    %p146 = por %p144, %p145
    %p147 = scmp.ne.s32.totalorder %s139, %s141
    %p148 = scmp.eq.s32.totalorder %s21, 1
    %p149 = por %p147, %p148
    %p150 = scmp.ne.s32.totalorder %s141, %s142
    %p151 = scmp.eq.s32.totalorder %s21, 0
    %p152 = por %p150, %p151
    %p153 = scmp.ne.s32.totalorder %s141, %s142
    %p154 = scmp.eq.s32.totalorder %s22, 1
    %p155 = por %p153, %p154
    %p157 = scmp.ne.s32.totalorder %s142, %s156
    %p158 = scmp.eq.s32.totalorder %s22, 0
    %p159 = por %p157, %p158
    %s161 = sadd.s32 %s160, 1
    %p164 = scmp.eq.s32.totalorder %s16, 1
    %p165 = scmp.ne.s32.totalorder %s160, %s162
    %p166 = scmp.eq.s32.totalorder %s16, 0
    %p167 = por %p165, %p166
    %p168 = scmp.ne.s32.totalorder %s160, %s162
    %p169 = scmp.eq.s32.totalorder %s21, 1
    %p170 = por %p168, %p169
    %p171 = scmp.ne.s32.totalorder %s162, %s163
    %p172 = scmp.eq.s32.totalorder %s21, 0
    %p173 = por %p171, %p172
    %p174 = scmp.ne.s32.totalorder %s162, %s163
    %p175 = scmp.eq.s32.totalorder %s22, 1
    %p176 = por %p174, %p175
    %p178 = scmp.ne.s32.totalorder %s163, %s177
    %p179 = scmp.eq.s32.totalorder %s22, 0
    %p180 = por %p178, %p179
    %s182 = sadd.s32 %s181, 1
    %p185 = scmp.eq.s32.totalorder %s16, 1
    %p186 = scmp.ne.s32.totalorder %s181, %s183
    %p187 = scmp.eq.s32.totalorder %s16, 0
    %p188 = por %p186, %p187
    %p189 = scmp.ne.s32.totalorder %s181, %s183
    %p190 = scmp.eq.s32.totalorder %s21, 1
    %p191 = por %p189, %p190
    %p192 = scmp.ne.s32.totalorder %s183, %s184
    %p193 = scmp.eq.s32.totalorder %s21, 0
    %p194 = por %p192, %p193
    %p195 = scmp.ne.s32.totalorder %s183, %s184
    %p196 = scmp.eq.s32.totalorder %s22, 1
    %p197 = por %p195, %p196
    %p199 = scmp.ne.s32.totalorder %s184, %s198
    %p200 = scmp.eq.s32.totalorder %s22, 0
    %p201 = por %p199, %p200
    %s203 = sadd.s32 %s202, 1
    %p206 = scmp.eq.s32.totalorder %s16, 1
    %p207 = scmp.ne.s32.totalorder %s202, %s204
    %p208 = scmp.eq.s32.totalorder %s16, 0
    %p209 = por %p207, %p208
    %p210 = scmp.ne.s32.totalorder %s202, %s204
    %p211 = scmp.eq.s32.totalorder %s21, 1
    %p212 = por %p210, %p211
    %p213 = scmp.ne.s32.totalorder %s204, %s205
    %p214 = scmp.eq.s32.totalorder %s21, 0
    %p215 = por %p213, %p214
    %p216 = scmp.ne.s32.totalorder %s204, %s205
    %p217 = scmp.eq.s32.totalorder %s22, 1
    %p218 = por %p216, %p217
    %p220 = scmp.ne.s32.totalorder %s205, %s219
    %p221 = scmp.eq.s32.totalorder %s22, 0
    %p222 = por %p220, %p221
    %s224 = sadd.s32 %s223, 1
    %p227 = scmp.eq.s32.totalorder %s16, 1
    %p228 = scmp.ne.s32.totalorder %s223, %s225
    %p229 = scmp.eq.s32.totalorder %s16, 0
    %p230 = por %p228, %p229
    %p231 = scmp.ne.s32.totalorder %s223, %s225
    %p232 = scmp.eq.s32.totalorder %s21, 1
    %p233 = por %p231, %p232
    %p234 = scmp.ne.s32.totalorder %s225, %s226
    %p235 = scmp.eq.s32.totalorder %s21, 0
    %p236 = por %p234, %p235
    %p237 = scmp.ne.s32.totalorder %s225, %s226
    %p238 = scmp.eq.s32.totalorder %s22, 1
    %p239 = por %p237, %p238
    %p241 = scmp.ne.s32.totalorder %s226, %s240
    %p242 = scmp.eq.s32.totalorder %s22, 0
    %p243 = por %p241, %p242
    %s244 = ssub.s32 %s16, %s23
    %p245 = scmp.eq.s32.totalorder %s244, 0
    %s247 = sadd.s32 %s246, 1
    %s248 = scalar_select %p245, %s246, %s247
    %p251 = pneg %p245
    %p252 = scmp.eq.s32.totalorder %s16, 1
    %p253 = por %p251, %p252
    %p254 = scmp.ne.s32.totalorder %s246, %s249
    %p255 = scmp.eq.s32.totalorder %s16, 0
    %p256 = por %p254, %p255
    %p257 = scmp.ne.s32.totalorder %s246, %s249
    %p258 = scmp.eq.s32.totalorder %s21, 1
    %p259 = por %p257, %p258
    %p260 = scmp.ne.s32.totalorder %s249, %s250
    %p261 = scmp.eq.s32.totalorder %s21, 0
    %p262 = por %p260, %p261
    %p263 = scmp.ne.s32.totalorder %s249, %s250
    %p264 = scmp.eq.s32.totalorder %s22, 1
    %p265 = por %p263, %p264
    %p267 = scmp.ne.s32.totalorder %s250, %s266
    %p268 = scmp.eq.s32.totalorder %s22, 0
    %p269 = por %p267, %p268
    %p270 = scmp.le.s32.totalorder 1, %s16
    %p271 = scmp.lt.s32.totalorder %s16, 3
    %p272 = pnand %p270, %p271
    %p273 = pneg %p272
    // Predicated region
    $region9: #{tpu_custom_call.1} parent=5 // pred_check
      _
    $region10: #{tpu_custom_call.1} parent=5 // pred_check_branch
      %275 = sbr.rel (%p272) target = $region12
    $region11: #{tpu_custom_call.1} parent=5 // pred_region
      %s276 = ssub.s32 %s16, 1
      // Predicated region
      $region13: #{tpu_custom_call.1} parent=11 // pred_check
        %p277 = pneg %p89
      $region14: #{tpu_custom_call.1} parent=11 // pred_check_branch
        %279 = sbr.rel (%p277) target = $region16
      $region15: #{tpu_custom_call.1} parent=11 // pred_region
        _
      $region16: #{tpu_custom_call.1} parent=11 // pred_fallthru
        _
      // Predicated region
      $region17: #{tpu_custom_call.1} parent=11 // pred_check
        %p280 = pneg %p110
      $region18: #{tpu_custom_call.1} parent=11 // pred_check_branch
        %282 = sbr.rel (%p280) target = $region20
      $region19: #{tpu_custom_call.1} parent=11 // pred_region
        _
      $region20: #{tpu_custom_call.1} parent=11 // pred_fallthru
        _
      // Predicated region
      $region21: #{tpu_custom_call.1} parent=11 // pred_check
        %p283 = pneg %p131
      $region22: #{tpu_custom_call.1} parent=11 // pred_check_branch
        %285 = sbr.rel (%p283) target = $region24
      $region23: #{tpu_custom_call.1} parent=11 // pred_region
        _
      $region24: #{tpu_custom_call.1} parent=11 // pred_fallthru
        _
      // Predicated region
      $region25: #{tpu_custom_call.1} parent=11 // pred_check
        %p286 = pneg %p152
      $region26: #{tpu_custom_call.1} parent=11 // pred_check_branch
        %288 = sbr.rel (%p286) target = $region28
      $region27: #{tpu_custom_call.1} parent=11 // pred_region
        _
      $region28: #{tpu_custom_call.1} parent=11 // pred_fallthru
        _
      // Predicated region
      $region29: #{tpu_custom_call.1} parent=11 // pred_check
        %p289 = pneg %p173
      $region30: #{tpu_custom_call.1} parent=11 // pred_check_branch
        %291 = sbr.rel (%p289) target = $region32
      $region31: #{tpu_custom_call.1} parent=11 // pred_region
        _
      $region32: #{tpu_custom_call.1} parent=11 // pred_fallthru
        _
      // Predicated region
      $region33: #{tpu_custom_call.1} parent=11 // pred_check
        %p292 = pneg %p194
      $region34: #{tpu_custom_call.1} parent=11 // pred_check_branch
        %294 = sbr.rel (%p292) target = $region36
      $region35: #{tpu_custom_call.1} parent=11 // pred_region
        _
      $region36: #{tpu_custom_call.1} parent=11 // pred_fallthru
        _
      // Predicated region
      $region37: #{tpu_custom_call.1} parent=11 // pred_check
        %p295 = pneg %p215
      $region38: #{tpu_custom_call.1} parent=11 // pred_check_branch
        %297 = sbr.rel (%p295) target = $region40
      $region39: #{tpu_custom_call.1} parent=11 // pred_region
        _
      $region40: #{tpu_custom_call.1} parent=11 // pred_fallthru
        _
      // Predicated region
      $region41: #{tpu_custom_call.1} parent=11 // pred_check
        %p298 = pneg %p236
      $region42: #{tpu_custom_call.1} parent=11 // pred_check_branch
        %300 = sbr.rel (%p298) target = $region44
      $region43: #{tpu_custom_call.1} parent=11 // pred_region
        _
      $region44: #{tpu_custom_call.1} parent=11 // pred_fallthru
        _
    $region12: #{tpu_custom_call.1} parent=5 // pred_fallthru
      _
    %p301 = scmp.lt.s32.totalorder %s16, 2
    // Predicated region
    $region45: #{tpu_custom_call.1} parent=5 // pred_check
      %p302 = pneg %p301
    $region46: #{tpu_custom_call.1} parent=5 // pred_check_branch
      %304 = sbr.rel (%p302) target = $region48
    $region47: #{tpu_custom_call.1} parent=5 // pred_region
      // Predicated region
      $region49: #{tpu_custom_call.1} parent=47 // pred_check
        %p305 = pneg %p36
      $region50: #{tpu_custom_call.1} parent=47 // pred_check_branch
        %307 = sbr.rel (%p305) target = $region52
      $region51: #{tpu_custom_call.1} parent=47 // pred_region
        %p308 = scmp.lt.s32.totalorder %s16, 1
        %s309 = scalar_select %p308, %s16, 1
        %s310 = smul.addr %s309, 3
        %s311 = smul.addr %s310, 4
        %s312 = scalar_lea.vmem %s0, %s311
      $region52: #{tpu_custom_call.1} parent=47 // pred_fallthru
        _
      // Predicated region
      $region53: #{tpu_custom_call.1} parent=47 // pred_check
        %p313 = pneg %p62
      $region54: #{tpu_custom_call.1} parent=47 // pred_check_branch
        %315 = sbr.rel (%p313) target = $region56
      $region55: #{tpu_custom_call.1} parent=47 // pred_region
        %p316 = scmp.lt.s32.totalorder %s16, 1
        %s317 = scalar_select %p316, %s16, 1
        %s318 = smul.addr %s317, 2
        %s319 = scalar_lea.vmem %s1, %s318
      $region56: #{tpu_custom_call.1} parent=47 // pred_fallthru
        _
    $region48: #{tpu_custom_call.1} parent=5 // pred_fallthru
      _
    %p320 = scmp.le.s32.totalorder 1, %s16
    %p321 = scmp.lt.s32.totalorder %s16, 3
    %p322 = pnand %p320, %p321
    %p323 = pneg %p322
    // Predicated region
    $region57: #{tpu_custom_call.1} parent=5 // pred_check
      _
    $region58: #{tpu_custom_call.1} parent=5 // pred_check_branch
      %325 = sbr.rel (%p322) target = $region60
    $region59: #{tpu_custom_call.1} parent=5 // pred_region
      %s326 = ssub.s32 %s16, 1
      %p327 = scmp.lt.s32.totalorder %s21, 1
      %s328 = scalar_select %p327, %s21, 1
      %s329 = smul.addr %s328, 3
      %s330 = smul.addr %s329, 4
      %s331 = scalar_lea.vmem %s0, %s330
      %p332 = pneg %p42
      %p333 = pneg %p39
      %p334 = scmp.lt.s32.totalorder %s21, 1
      %s335 = scalar_select %p334, %s21, 1
      %s336 = smul.addr %s335, 2
      %s337 = scalar_lea.vmem %s1, %s336
      %p338 = pneg %p68
      %p339 = pneg %p65
      %p340 = pneg %p89
      %p341 = pneg %p86
      %p342 = pneg %p110
      %p343 = pneg %p107
      %p344 = pneg %p131
      %p345 = pneg %p128
      %p346 = pneg %p152
      %p347 = pneg %p149
      %p348 = pneg %p173
      %p349 = pneg %p170
      %p350 = pneg %p194
      %p351 = pneg %p191
      %p352 = pneg %p215
      %p353 = pneg %p212
      %p354 = pneg %p236
      %p355 = pneg %p233
      %p356 = pneg %p262
      %p357 = pneg %p259
      %p358 = scmp.lt.s32.totalorder %s21, 1
      %s359 = scalar_select %p358, %s21, 1
      %s360 = smul.addr %s359, 4
      %s361 = smul.addr %s360, 4
      %s362 = scalar_lea.vmem %s10, %s361
      %p363 = scmp.lt.s32.totalorder %s21, 1
      %s364 = scalar_select %p363, %s21, 1
      %s365 = smul.addr %s364, 3
      %s366 = smul.addr %s365, 4
      %s367 = scalar_lea.vmem %s0, %s366
      %p368 = scmp.lt.s32.totalorder %s21, 1
      %s369 = scalar_select %p368, %s21, 1
      %s370 = smul.addr %s369, 2
      %s371 = scalar_lea.vmem %s1, %s370
      %p372 = scmp.lt.s32.totalorder %s21, 1
      %s373 = scalar_select %p372, %s21, 1
      %s374 = smul.addr %s373, 4
      %s375 = smul.addr %s374, 4
      %s376 = scalar_lea.vmem %s10, %s375
      %v378 = vld [vmem:[%s371] sm:$0x3]
      %v379 = vld [vmem:[%s4] sm:$0xff]
      %v380 = vld [vmem:[%s4 + $0x8] sm:$0xff]
      %v381 = vld [vmem:[%s4 + $0x10] sm:$0xff]
      %v382 = vld [vmem:[%s4 + $0x18] sm:$0xff]
      %v383 = vld [vmem:[%s5] sm:$0xff]
      %v384 = vld [vmem:[%s5 + $0x8] sm:$0xff]
      %v385 = vld [vmem:[%s5 + $0x10] sm:$0xff]
      %v386 = vld [vmem:[%s5 + $0x18] sm:$0xff]
      %v387 = vld [vmem:[%s6] sm:$0xff]
      %v388 = vld [vmem:[%s6 + $0x8] sm:$0xff]
      %v389 = vld [vmem:[%s6 + $0x10] sm:$0xff]
      %v390 = vld [vmem:[%s6 + $0x18] sm:$0xff]
      %v391 = vld [vmem:[%s7] sm:$0xf]
      %v392 = vld [vmem:[%s7 + $0x4] sm:$0xf]
      %v393 = vld [vmem:[%s7 + $0x8] sm:$0xf]
      %v394 = vld [vmem:[%s7 + $0xc] sm:$0xf]
      %v395 = vld [vmem:[%s8] sm:$0xf]
      %v396 = vld [vmem:[%s8 + $0x4] sm:$0xf]
      %v397 = vld [vmem:[%s8 + $0x8] sm:$0xf]
      %v398 = vld [vmem:[%s8 + $0xc] sm:$0xf]
      %v399 = vld [vmem:[%s9] sm:$0xff]
      %v400 = vld [vmem:[%s9 + $0x8] sm:$0xff]
      %v401 = vld [vmem:[%s9 + $0x10] sm:$0xff]
      %v402 = vld [vmem:[%s9 + $0x18] sm:$0xff]
      %v403 = vld [vmem:[%s2] sm:$0x1]
      %v404 = vld [vmem:[%s367] sm:$0xf]
      %v405 = vld [vmem:[%s367 + $0x4] sm:$0xf]
      %v406 = vld [vmem:[%s367 + $0x8] sm:$0x1]
      %v408 = vpack.i.b16 %v403, %v403
      %v410 = vlaneseq
      %v411 = vshrl.u32 %v410, 7
      %v412 = vsub.s32 0, %v411
      %v413 = vrot.slane %v408, %v412
      %v415 = vunpack.c.l.b16 %v413
      %v416 = vpack.c.b16 %v415, %v415
      %v418 = vmul.bf16 %v404, %v416
      %v419 = vmul.bf16 %v405, %v416
      %v420 = vmul.bf16 %v406, %v416
      %v421 = vld [vmem:[%s3] sm:$0xf]
      %v422 = vld [vmem:[%s3 + $0x4] sm:$0xf]
      %v423 = vld [vmem:[%s3 + $0x8] sm:$0xf]
      %v424 = vld [vmem:[%s3 + $0xc] sm:$0xf]
      %s425 = scalar_lea.vmem %s3, 16
      %v426 = vld [vmem:[%s425] sm:$0xf]
      %v427 = vld [vmem:[%s425 + $0x4] sm:$0xf]
      %v428 = vld [vmem:[%s425 + $0x8] sm:$0xf]
      %v429 = vld [vmem:[%s425 + $0xc] sm:$0xf]
      %v434 = vunpack.c.l.b16 %v426
      %v435 = vunpack.c.l.b16 %v427
      %v436 = vunpack.c.l.b16 %v428
      %v437 = vunpack.c.l.b16 %v429
      %v438 = vpack.c.b16 %v435, %v434
      %v439 = vpack.c.b16 %v437, %v436
      %v443 = vunpack.c.l.b16 %v404
      %v444 = vunpack.c.l.b16 %v405
      %v445 = vunpack.c.l.b16 %v406
      %v446 = vpack.c.b16 %v444, %v443
      %v447 = vpack.c.b16 %v445, %v445
      %448 = vrot.lane.b32.xlu0 %v446, 127
      %v449 = vpop.permute.xlu0 %448
      %450 = vrot.lane.b32.xlu0 %v447, 127
      %v451 = vpop.permute.xlu0 %450
      %vm453 = vcmask 138240
      %v455 = vsel %vm453, %v438, 0
      %v458 = vsel %vm453, %v439, 0
      %vm460 = vcmask 1040384
      %v461 = vsel 0, 4294967295, 65535
      %v462 = vsel %vm460, %v461, 0
      %v464 = vand.u32 %v451, %v462
      %466 = vmatprep.subr.bf16.mxu0 0
      %467 = vmatpush1.bf16.msra.mxu0 %v449
      %468 = vmatprep.subr.bf16.mxu0 0
      %469 = vmatpush1.bf16.msra.mxu0 %v464
      %470 = vmatprep.subr.bf16.mxu0 0
      %471 = vmatpush1.bf16.msra.mxu0 0
      %472 = vmatprep.subr.bf16.mxu0 0
      %473 = vmatpush1.bf16.msra.mxu0 0
      %474 = vmatprep.subr.bf16.mxu0 0
      %475 = vmatpush1.bf16.msra.mxu0 0
      %476 = vmatprep.subr.bf16.mxu0 0
      %477 = vmatpush1.bf16.msra.mxu0 0
      %478 = vmatprep.subr.bf16.mxu0 0
      %479 = vmatpush1.bf16.msra.mxu0 0
      %480 = vmatprep.subr.bf16.mxu0 0
      %481 = vmatpush1.bf16.msra.mxu0 0
      %482 = vmatprep.subr.bf16.mxu0 0
      %483 = vmatpush1.bf16.msra.mxu0 0
      %484 = vmatprep.subr.bf16.mxu0 0
      %485 = vmatpush1.bf16.msra.mxu0 0
      %486 = vmatprep.subr.bf16.mxu0 0
      %487 = vmatpush1.bf16.msra.mxu0 0
      %488 = vmatprep.subr.bf16.mxu0 0
      %489 = vmatpush1.bf16.msra.mxu0 0
      %490 = vmatprep.subr.bf16.mxu0 0
      %491 = vmatpush1.bf16.msra.mxu0 0
      %492 = vmatprep.subr.bf16.mxu0 0
      %493 = vmatpush1.bf16.msra.mxu0 0
      %494 = vmatprep.subr.bf16.mxu0 0
      %495 = vmatpush1.bf16.msra.mxu0 0
      %496 = vmatprep.subr.bf16.mxu0 0
      %497 = vmatpush1.bf16.msra.mxu0 0
      %498 = vmatprep.mubr.bf16.mxu0 0
      %499 = vmatmul.mubr.bf16.gmra.mrb[0].mxu0 %v455
      %v500 = vpop.f32.mrb[0].mxu0
      %v501 = vadd.f32 0.0, %v500
      %v502 = vpop.f32.mrb[0].mxu0
      %v503 = vpop.f32.mrb[0].mxu0
      %v504 = vadd.f32 0.0, %v503
      %v505 = vpop.f32.mrb[0].mxu0
      %506 = vmatprep.mubr.bf16.mxu0 0
      %507 = vmatmul.mubr.bf16.gmra.mrb[0].mxu0 %v458
      %v508 = vpop.f32.mrb[0].mxu0
      %v509 = vadd.f32 0.0, %v508
      %v510 = vpop.f32.mrb[0].mxu0
      %v511 = vpop.f32.mrb[0].mxu0
      %v512 = vadd.f32 0.0, %v511
      %v513 = vpop.f32.mrb[0].mxu0
      %514 = vdwg.mxu0
      %v519 = vunpack.c.l.b16 %v421
      %v520 = vunpack.c.l.b16 %v422
      %v521 = vunpack.c.l.b16 %v423
      %v522 = vunpack.c.l.b16 %v424
      %v523 = vpack.c.b16 %v520, %v519
      %v524 = vpack.c.b16 %v522, %v521
      %v528 = vunpack.c.l.b16 %v418
      %v529 = vunpack.c.l.b16 %v419
      %v530 = vunpack.c.l.b16 %v420
      %v531 = vpack.c.b16 %v529, %v528
      %v532 = vpack.c.b16 %v530, %v530
      %v535 = vsel %vm453, %v523, 0
      %v538 = vsel %vm453, %v524, 0
      %v541 = vand.u32 %v532, %v462
      %543 = vmatprep.subr.bf16.mxu0 0
      %544 = vmatpush1.bf16.msra.mxu0 %v531
      %545 = vmatprep.subr.bf16.mxu0 0
      %546 = vmatpush1.bf16.msra.mxu0 %v541
      %547 = vmatprep.subr.bf16.mxu0 0
      %548 = vmatpush1.bf16.msra.mxu0 0
      %549 = vmatprep.subr.bf16.mxu0 0
      %550 = vmatpush1.bf16.msra.mxu0 0
      %551 = vmatprep.subr.bf16.mxu0 0
      %552 = vmatpush1.bf16.msra.mxu0 0
      %553 = vmatprep.subr.bf16.mxu0 0
      %554 = vmatpush1.bf16.msra.mxu0 0
      %555 = vmatprep.subr.bf16.mxu0 0
      %556 = vmatpush1.bf16.msra.mxu0 0
      %557 = vmatprep.subr.bf16.mxu0 0
      %558 = vmatpush1.bf16.msra.mxu0 0
      %559 = vmatprep.subr.bf16.mxu0 0
      %560 = vmatpush1.bf16.msra.mxu0 0
      %561 = vmatprep.subr.bf16.mxu0 0
      %562 = vmatpush1.bf16.msra.mxu0 0
      %563 = vmatprep.subr.bf16.mxu0 0
      %564 = vmatpush1.bf16.msra.mxu0 0
      %565 = vmatprep.subr.bf16.mxu0 0
      %566 = vmatpush1.bf16.msra.mxu0 0
      %567 = vmatprep.subr.bf16.mxu0 0
      %568 = vmatpush1.bf16.msra.mxu0 0
      %569 = vmatprep.subr.bf16.mxu0 0
      %570 = vmatpush1.bf16.msra.mxu0 0
      %571 = vmatprep.subr.bf16.mxu0 0
      %572 = vmatpush1.bf16.msra.mxu0 0
      %573 = vmatprep.subr.bf16.mxu0 0
      %574 = vmatpush1.bf16.msra.mxu0 0
      %575 = vmatprep.mubr.bf16.mxu0 0
      %576 = vmatmul.mubr.bf16.gmra.mrb[0].mxu0 %v535
      %v577 = vpop.f32.mrb[0].mxu0
      %v578 = vadd.f32 %v501, %v577
      %v579 = vpop.f32.mrb[0].mxu0
      %v580 = vpop.f32.mrb[0].mxu0
      %v581 = vadd.f32 %v504, %v580
      %v582 = vpop.f32.mrb[0].mxu0
      %583 = vmatprep.mubr.bf16.mxu0 0
      %584 = vmatmul.mubr.bf16.gmra.mrb[0].mxu0 %v538
      %v585 = vpop.f32.mrb[0].mxu0
      %v586 = vadd.f32 %v509, %v585
      %v587 = vpop.f32.mrb[0].mxu0
      %v588 = vpop.f32.mrb[0].mxu0
      %v589 = vadd.f32 %v512, %v588
      %v590 = vpop.f32.mrb[0].mxu0
      %591 = vdwg.mxu0
      %v592 = vshrl.u32 %v403, 16
      %v593 = vpack.i.b16 %v592, %v592
      %v595 = vlaneseq
      %v596 = vshrl.u32 %v595, 7
      %v597 = vsub.s32 0, %v596
      %v598 = vrot.slane %v593, %v597
      %v600 = vunpack.c.l.b16 %v598
      %v601 = vpack.c.b16 %v600, %v600
      %602 = vrot.lane.b32.xlu0 %v601, 2
      %v603 = vpop.permute.xlu0 %602
      %v605 = vmul.bf16 %v404, %v603
      %v606 = vmul.bf16 %v405, %v603
      %v607 = vmul.bf16 %v406, %v603
      %s608 = scalar_lea.vmem %s3, 32
      %v609 = vld [vmem:[%s608] sm:$0xf]
      %v610 = vld [vmem:[%s608 + $0x4] sm:$0xf]
      %v611 = vld [vmem:[%s608 + $0x8] sm:$0xf]
      %v612 = vld [vmem:[%s608 + $0xc] sm:$0xf]
      %v617 = vunpack.c.l.b16 %v609
      %v618 = vunpack.c.l.b16 %v610
      %v619 = vunpack.c.l.b16 %v611
      %v620 = vunpack.c.l.b16 %v612
      %v621 = vpack.c.b16 %v618, %v617
      %v622 = vpack.c.b16 %v620, %v619
      %v626 = vunpack.c.l.b16 %v605
      %v627 = vunpack.c.l.b16 %v606
      %v628 = vunpack.c.l.b16 %v607
      %v629 = vpack.c.b16 %v627, %v626
      %v630 = vpack.c.b16 %v628, %v628
      %631 = vrot.lane.b32.xlu0 %v629, 126
      %v632 = vpop.permute.xlu0 %631
      %633 = vrot.lane.b32.xlu0 %v630, 126
      %v634 = vpop.permute.xlu0 %633
      %v637 = vsel %vm453, %v621, 0
      %v640 = vsel %vm453, %v622, 0
      %v643 = vand.u32 %v634, %v462
      %645 = vmatprep.subr.bf16.mxu0 0
      %646 = vmatpush1.bf16.msra.mxu0 %v632
      %647 = vmatprep.subr.bf16.mxu0 0
      %648 = vmatpush1.bf16.msra.mxu0 %v643
      %649 = vmatprep.subr.bf16.mxu0 0
      %650 = vmatpush1.bf16.msra.mxu0 0
      %651 = vmatprep.subr.bf16.mxu0 0
      %652 = vmatpush1.bf16.msra.mxu0 0
      %653 = vmatprep.subr.bf16.mxu0 0
      %654 = vmatpush1.bf16.msra.mxu0 0
      %655 = vmatprep.subr.bf16.mxu0 0
      %656 = vmatpush1.bf16.msra.mxu0 0
      %657 = vmatprep.subr.bf16.mxu0 0
      %658 = vmatpush1.bf16.msra.mxu0 0
      %659 = vmatprep.subr.bf16.mxu0 0
      %660 = vmatpush1.bf16.msra.mxu0 0
      %661 = vmatprep.subr.bf16.mxu0 0
      %662 = vmatpush1.bf16.msra.mxu0 0
      %663 = vmatprep.subr.bf16.mxu0 0
      %664 = vmatpush1.bf16.msra.mxu0 0
      %665 = vmatprep.subr.bf16.mxu0 0
      %666 = vmatpush1.bf16.msra.mxu0 0
      %667 = vmatprep.subr.bf16.mxu0 0
      %668 = vmatpush1.bf16.msra.mxu0 0
      %669 = vmatprep.subr.bf16.mxu0 0
      %670 = vmatpush1.bf16.msra.mxu0 0
      %671 = vmatprep.subr.bf16.mxu0 0
      %672 = vmatpush1.bf16.msra.mxu0 0
      %673 = vmatprep.subr.bf16.mxu0 0
      %674 = vmatpush1.bf16.msra.mxu0 0
      %675 = vmatprep.subr.bf16.mxu0 0
      %676 = vmatpush1.bf16.msra.mxu0 0
      %677 = vmatprep.mubr.bf16.mxu0 0
      %678 = vmatmul.mubr.bf16.gmra.mrb[0].mxu0 %v637
      %v679 = vpop.f32.mrb[0].mxu0
      %v680 = vadd.f32 0.0, %v679
      %v681 = vpop.f32.mrb[0].mxu0
      %v682 = vpop.f32.mrb[0].mxu0
      %v683 = vadd.f32 0.0, %v682
      %v684 = vpop.f32.mrb[0].mxu0
      %685 = vmatprep.mubr.bf16.mxu0 0
      %686 = vmatmul.mubr.bf16.gmra.mrb[0].mxu0 %v640
      %v687 = vpop.f32.mrb[0].mxu0
      %v688 = vadd.f32 0.0, %v687
      %v689 = vpop.f32.mrb[0].mxu0
      %v690 = vpop.f32.mrb[0].mxu0
      %v691 = vadd.f32 0.0, %v690
      %v692 = vpop.f32.mrb[0].mxu0
      %693 = vdwg.mxu0
      %v694 = vadd.f32 %v578, %v680
      %v695 = vadd.f32 %v581, %v683
      %v696 = vadd.f32 %v586, %v688
      %v697 = vadd.f32 %v589, %v691
      %698 = vrot.lane.b32.xlu0 %v416, 4
      %v699 = vpop.permute.xlu0 %698
      %v701 = vmul.bf16 %v404, %v699
      %v702 = vmul.bf16 %v405, %v699
      %v703 = vmul.bf16 %v406, %v699
      %s704 = scalar_lea.vmem %s3, 48
      %v705 = vld [vmem:[%s704] sm:$0xf]
      %v706 = vld [vmem:[%s704 + $0x4] sm:$0xf]
      %v707 = vld [vmem:[%s704 + $0x8] sm:$0xf]
      %v708 = vld [vmem:[%s704 + $0xc] sm:$0xf]
      %v713 = vunpack.c.l.b16 %v705
      %v714 = vunpack.c.l.b16 %v706
      %v715 = vunpack.c.l.b16 %v707
      %v716 = vunpack.c.l.b16 %v708
      %v717 = vpack.c.b16 %v714, %v713
      %v718 = vpack.c.b16 %v716, %v715
      %v722 = vunpack.c.l.b16 %v701
      %v723 = vunpack.c.l.b16 %v702
      %v724 = vunpack.c.l.b16 %v703
      %v725 = vpack.c.b16 %v723, %v722
      %v726 = vpack.c.b16 %v724, %v724
      %727 = vrot.lane.b32.xlu0 %v725, 124
      %v728 = vpop.permute.xlu0 %727
      %729 = vrot.lane.b32.xlu0 %v726, 124
      %v730 = vpop.permute.xlu0 %729
      %v733 = vsel %vm453, %v717, 0
      %v736 = vsel %vm453, %v718, 0
      %v739 = vand.u32 %v730, %v462
      %741 = vmatprep.subr.bf16.mxu0 0
      %742 = vmatpush1.bf16.msra.mxu0 %v728
      %743 = vmatprep.subr.bf16.mxu0 0
      %744 = vmatpush1.bf16.msra.mxu0 %v739
      %745 = vmatprep.subr.bf16.mxu0 0
      %746 = vmatpush1.bf16.msra.mxu0 0
      %747 = vmatprep.subr.bf16.mxu0 0
      %748 = vmatpush1.bf16.msra.mxu0 0
      %749 = vmatprep.subr.bf16.mxu0 0
      %750 = vmatpush1.bf16.msra.mxu0 0
      %751 = vmatprep.subr.bf16.mxu0 0
      %752 = vmatpush1.bf16.msra.mxu0 0
      %753 = vmatprep.subr.bf16.mxu0 0
      %754 = vmatpush1.bf16.msra.mxu0 0
      %755 = vmatprep.subr.bf16.mxu0 0
      %756 = vmatpush1.bf16.msra.mxu0 0
      %757 = vmatprep.subr.bf16.mxu0 0
      %758 = vmatpush1.bf16.msra.mxu0 0
      %759 = vmatprep.subr.bf16.mxu0 0
      %760 = vmatpush1.bf16.msra.mxu0 0
      %761 = vmatprep.subr.bf16.mxu0 0
      %762 = vmatpush1.bf16.msra.mxu0 0
      %763 = vmatprep.subr.bf16.mxu0 0
      %764 = vmatpush1.bf16.msra.mxu0 0
      %765 = vmatprep.subr.bf16.mxu0 0
      %766 = vmatpush1.bf16.msra.mxu0 0
      %767 = vmatprep.subr.bf16.mxu0 0
      %768 = vmatpush1.bf16.msra.mxu0 0
      %769 = vmatprep.subr.bf16.mxu0 0
      %770 = vmatpush1.bf16.msra.mxu0 0
      %771 = vmatprep.subr.bf16.mxu0 0
      %772 = vmatpush1.bf16.msra.mxu0 0
      %773 = vmatprep.mubr.bf16.mxu0 0
      %774 = vmatmul.mubr.bf16.gmra.mrb[0].mxu0 %v733
      %v775 = vpop.f32.mrb[0].mxu0
      %v776 = vadd.f32 0.0, %v775
      %v777 = vpop.f32.mrb[0].mxu0
      %v778 = vpop.f32.mrb[0].mxu0
      %v779 = vadd.f32 0.0, %v778
      %v780 = vpop.f32.mrb[0].mxu0
      %781 = vmatprep.mubr.bf16.mxu0 0
      %782 = vmatmul.mubr.bf16.gmra.mrb[0].mxu0 %v736
      %v783 = vpop.f32.mrb[0].mxu0
      %v784 = vadd.f32 0.0, %v783
      %v785 = vpop.f32.mrb[0].mxu0
      %v786 = vpop.f32.mrb[0].mxu0
      %v787 = vadd.f32 0.0, %v786
      %v788 = vpop.f32.mrb[0].mxu0
      %789 = vdwg.mxu0
      %v790 = vadd.f32 %v694, %v776
      %v791 = vadd.f32 %v695, %v779
      %v792 = vadd.f32 %v696, %v784
      %v793 = vadd.f32 %v697, %v787
      %s794 = scalar_lea.vmem %s3, 64
      %v795 = vld [vmem:[%s794] sm:$0xf]
      %v796 = vld [vmem:[%s794 + $0x4] sm:$0xf]
      %v797 = vld [vmem:[%s794 + $0x8] sm:$0xf]
      %v798 = vld [vmem:[%s794 + $0xc] sm:$0xf]
      %v803 = vunpack.c.l.b16 %v795
      %v804 = vunpack.c.l.b16 %v796
      %v805 = vunpack.c.l.b16 %v797
      %v806 = vunpack.c.l.b16 %v798
      %v807 = vpack.c.b16 %v804, %v803
      %v808 = vpack.c.b16 %v806, %v805
      %809 = vrot.lane.b32.xlu0 %v446, 123
      %v810 = vpop.permute.xlu0 %809
      %811 = vrot.lane.b32.xlu0 %v447, 123
      %v812 = vpop.permute.xlu0 %811
      %v815 = vsel %vm453, %v807, 0
      %v818 = vsel %vm453, %v808, 0
      %v821 = vand.u32 %v812, %v462
      %823 = vmatprep.subr.bf16.mxu0 0
      %824 = vmatpush1.bf16.msra.mxu0 %v810
      %825 = vmatprep.subr.bf16.mxu0 0
      %826 = vmatpush1.bf16.msra.mxu0 %v821
      %827 = vmatprep.subr.bf16.mxu0 0
      %828 = vmatpush1.bf16.msra.mxu0 0
      %829 = vmatprep.subr.bf16.mxu0 0
      %830 = vmatpush1.bf16.msra.mxu0 0
      %831 = vmatprep.subr.bf16.mxu0 0
      %832 = vmatpush1.bf16.msra.mxu0 0
      %833 = vmatprep.subr.bf16.mxu0 0
      %834 = vmatpush1.bf16.msra.mxu0 0
      %835 = vmatprep.subr.bf16.mxu0 0
      %836 = vmatpush1.bf16.msra.mxu0 0
      %837 = vmatprep.subr.bf16.mxu0 0
      %838 = vmatpush1.bf16.msra.mxu0 0
      %839 = vmatprep.subr.bf16.mxu0 0
      %840 = vmatpush1.bf16.msra.mxu0 0
      %841 = vmatprep.subr.bf16.mxu0 0
      %842 = vmatpush1.bf16.msra.mxu0 0
      %843 = vmatprep.subr.bf16.mxu0 0
      %844 = vmatpush1.bf16.msra.mxu0 0
      %845 = vmatprep.subr.bf16.mxu0 0
      %846 = vmatpush1.bf16.msra.mxu0 0
      %847 = vmatprep.subr.bf16.mxu0 0
      %848 = vmatpush1.bf16.msra.mxu0 0
      %849 = vmatprep.subr.bf16.mxu0 0
      %850 = vmatpush1.bf16.msra.mxu0 0
      %851 = vmatprep.subr.bf16.mxu0 0
      %852 = vmatpush1.bf16.msra.mxu0 0
      %853 = vmatprep.subr.bf16.mxu0 0
      %854 = vmatpush1.bf16.msra.mxu0 0
      %855 = vmatprep.mubr.bf16.mxu0 0
      %856 = vmatmul.mubr.bf16.gmra.mrb[0].mxu0 %v815
      %v857 = vpop.f32.mrb[0].mxu0
      %v858 = vadd.f32 0.0, %v857
      %v859 = vpop.f32.mrb[0].mxu0
      %v860 = vpop.f32.mrb[0].mxu0
      %v861 = vadd.f32 0.0, %v860
      %v862 = vpop.f32.mrb[0].mxu0
      %863 = vmatprep.mubr.bf16.mxu0 0
      %864 = vmatmul.mubr.bf16.gmra.mrb[0].mxu0 %v818
      %v865 = vpop.f32.mrb[0].mxu0
      %v866 = vadd.f32 0.0, %v865
      %v867 = vpop.f32.mrb[0].mxu0
      %v868 = vpop.f32.mrb[0].mxu0
      %v869 = vadd.f32 0.0, %v868
      %v870 = vpop.f32.mrb[0].mxu0
      %871 = vdwg.mxu0
      %v872 = vadd.f32 %v790, %v858
      %v873 = vadd.f32 %v791, %v861
      %v874 = vadd.f32 %v792, %v866
      %v875 = vadd.f32 %v793, %v869
      %876 = vrot.lane.b32.xlu0 %v601, 6
      %v877 = vpop.permute.xlu0 %876
      %v879 = vmul.bf16 %v404, %v877
      %v880 = vmul.bf16 %v405, %v877
      %v881 = vmul.bf16 %v406, %v877
      %s882 = scalar_lea.vmem %s3, 80
      %v883 = vld [vmem:[%s882] sm:$0xf]
      %v884 = vld [vmem:[%s882 + $0x4] sm:$0xf]
      %v885 = vld [vmem:[%s882 + $0x8] sm:$0xf]
      %v886 = vld [vmem:[%s882 + $0xc] sm:$0xf]
      %v891 = vunpack.c.l.b16 %v883
      %v892 = vunpack.c.l.b16 %v884
      %v893 = vunpack.c.l.b16 %v885
      %v894 = vunpack.c.l.b16 %v886
      %v895 = vpack.c.b16 %v892, %v891
      %v896 = vpack.c.b16 %v894, %v893
      %v900 = vunpack.c.l.b16 %v879
      %v901 = vunpack.c.l.b16 %v880
      %v902 = vunpack.c.l.b16 %v881
      %v903 = vpack.c.b16 %v901, %v900
      %v904 = vpack.c.b16 %v902, %v902
      %905 = vrot.lane.b32.xlu0 %v903, 122
      %v906 = vpop.permute.xlu0 %905
      %907 = vrot.lane.b32.xlu0 %v904, 122
      %v908 = vpop.permute.xlu0 %907
      %v911 = vsel %vm453, %v895, 0
      %v914 = vsel %vm453, %v896, 0
      %v917 = vand.u32 %v908, %v462
      %919 = vmatprep.subr.bf16.mxu0 0
      %920 = vmatpush1.bf16.msra.mxu0 %v906
      %921 = vmatprep.subr.bf16.mxu0 0
      %922 = vmatpush1.bf16.msra.mxu0 %v917
      %923 = vmatprep.subr.bf16.mxu0 0
      %924 = vmatpush1.bf16.msra.mxu0 0
      %925 = vmatprep.subr.bf16.mxu0 0
      %926 = vmatpush1.bf16.msra.mxu0 0
      %927 = vmatprep.subr.bf16.mxu0 0
      %928 = vmatpush1.bf16.msra.mxu0 0
      %929 = vmatprep.subr.bf16.mxu0 0
      %930 = vmatpush1.bf16.msra.mxu0 0
      %931 = vmatprep.subr.bf16.mxu0 0
      %932 = vmatpush1.bf16.msra.mxu0 0
      %933 = vmatprep.subr.bf16.mxu0 0
      %934 = vmatpush1.bf16.msra.mxu0 0
      %935 = vmatprep.subr.bf16.mxu0 0
      %936 = vmatpush1.bf16.msra.mxu0 0
      %937 = vmatprep.subr.bf16.mxu0 0
      %938 = vmatpush1.bf16.msra.mxu0 0
      %939 = vmatprep.subr.bf16.mxu0 0
      %940 = vmatpush1.bf16.msra.mxu0 0
      %941 = vmatprep.subr.bf16.mxu0 0
      %942 = vmatpush1.bf16.msra.mxu0 0
      %943 = vmatprep.subr.bf16.mxu0 0
      %944 = vmatpush1.bf16.msra.mxu0 0
      %945 = vmatprep.subr.bf16.mxu0 0
      %946 = vmatpush1.bf16.msra.mxu0 0
      %947 = vmatprep.subr.bf16.mxu0 0
      %948 = vmatpush1.bf16.msra.mxu0 0
      %949 = vmatprep.subr.bf16.mxu0 0
      %950 = vmatpush1.bf16.msra.mxu0 0
      %951 = vmatprep.mubr.bf16.mxu0 0
      %952 = vmatmul.mubr.bf16.gmra.mrb[0].mxu0 %v911
      %v953 = vpop.f32.mrb[0].mxu0
      %v954 = vadd.f32 0.0, %v953
      %v955 = vpop.f32.mrb[0].mxu0
      %v956 = vpop.f32.mrb[0].mxu0
      %v957 = vadd.f32 0.0, %v956
      %v958 = vpop.f32.mrb[0].mxu0
      %959 = vmatprep.mubr.bf16.mxu0 0
      %960 = vmatmul.mubr.bf16.gmra.mrb[0].mxu0 %v914
      %v961 = vpop.f32.mrb[0].mxu0
      %v962 = vadd.f32 0.0, %v961
      %v963 = vpop.f32.mrb[0].mxu0
      %v964 = vpop.f32.mrb[0].mxu0
      %v965 = vadd.f32 0.0, %v964
      %v966 = vpop.f32.mrb[0].mxu0
      %967 = vdwg.mxu0
      %v968 = vadd.f32 %v872, %v954
      %v969 = vadd.f32 %v873, %v957
      %v970 = vadd.f32 %v874, %v962
      %v971 = vadd.f32 %v875, %v965
      %972 = vrot.lane.b32.xlu0 %v416, 8
      %v973 = vpop.permute.xlu0 %972
      %v975 = vmul.bf16 %v404, %v973
      %v976 = vmul.bf16 %v405, %v973
      %v977 = vmul.bf16 %v406, %v973
      %s978 = scalar_lea.vmem %s3, 96
      %v979 = vld [vmem:[%s978] sm:$0xf]
      %v980 = vld [vmem:[%s978 + $0x4] sm:$0xf]
      %v981 = vld [vmem:[%s978 + $0x8] sm:$0xf]
      %v982 = vld [vmem:[%s978 + $0xc] sm:$0xf]
      %v987 = vunpack.c.l.b16 %v979
      %v988 = vunpack.c.l.b16 %v980
      %v989 = vunpack.c.l.b16 %v981
      %v990 = vunpack.c.l.b16 %v982
      %v991 = vpack.c.b16 %v988, %v987
      %v992 = vpack.c.b16 %v990, %v989
      %v996 = vunpack.c.l.b16 %v975
      %v997 = vunpack.c.l.b16 %v976
      %v998 = vunpack.c.l.b16 %v977
      %v999 = vpack.c.b16 %v997, %v996
      %v1000 = vpack.c.b16 %v998, %v998
      %1001 = vrot.lane.b32.xlu0 %v999, 120
      %v1002 = vpop.permute.xlu0 %1001
      %1003 = vrot.lane.b32.xlu0 %v1000, 120
      %v1004 = vpop.permute.xlu0 %1003
      %v1007 = vsel %vm453, %v991, 0
      %v1010 = vsel %vm453, %v992, 0
      %v1013 = vand.u32 %v1004, %v462
      %1015 = vmatprep.subr.bf16.mxu0 0
      %1016 = vmatpush1.bf16.msra.mxu0 %v1002
      %1017 = vmatprep.subr.bf16.mxu0 0
      %1018 = vmatpush1.bf16.msra.mxu0 %v1013
      %1019 = vmatprep.subr.bf16.mxu0 0
      %1020 = vmatpush1.bf16.msra.mxu0 0
      %1021 = vmatprep.subr.bf16.mxu0 0
      %1022 = vmatpush1.bf16.msra.mxu0 0
      %1023 = vmatprep.subr.bf16.mxu0 0
      %1024 = vmatpush1.bf16.msra.mxu0 0
      %1025 = vmatprep.subr.bf16.mxu0 0
      %1026 = vmatpush1.bf16.msra.mxu0 0
      %1027 = vmatprep.subr.bf16.mxu0 0
      %1028 = vmatpush1.bf16.msra.mxu0 0
      %1029 = vmatprep.subr.bf16.mxu0 0
      %1030 = vmatpush1.bf16.msra.mxu0 0
      %1031 = vmatprep.subr.bf16.mxu0 0
      %1032 = vmatpush1.bf16.msra.mxu0 0
      %1033 = vmatprep.subr.bf16.mxu0 0
      %1034 = vmatpush1.bf16.msra.mxu0 0
      %1035 = vmatprep.subr.bf16.mxu0 0
      %1036 = vmatpush1.bf16.msra.mxu0 0
      %1037 = vmatprep.subr.bf16.mxu0 0
      %1038 = vmatpush1.bf16.msra.mxu0 0
      %1039 = vmatprep.subr.bf16.mxu0 0
      %1040 = vmatpush1.bf16.msra.mxu0 0
      %1041 = vmatprep.subr.bf16.mxu0 0
      %1042 = vmatpush1.bf16.msra.mxu0 0
      %1043 = vmatprep.subr.bf16.mxu0 0
      %1044 = vmatpush1.bf16.msra.mxu0 0
      %1045 = vmatprep.subr.bf16.mxu0 0
      %1046 = vmatpush1.bf16.msra.mxu0 0
      %1047 = vmatprep.mubr.bf16.mxu0 0
      %1048 = vmatmul.mubr.bf16.gmra.mrb[0].mxu0 %v1007
      %v1049 = vpop.f32.mrb[0].mxu0
      %v1050 = vadd.f32 0.0, %v1049
      %v1051 = vpop.f32.mrb[0].mxu0
      %v1052 = vpop.f32.mrb[0].mxu0
      %v1053 = vadd.f32 0.0, %v1052
      %v1054 = vpop.f32.mrb[0].mxu0
      %1055 = vmatprep.mubr.bf16.mxu0 0
      %1056 = vmatmul.mubr.bf16.gmra.mrb[0].mxu0 %v1010
      %v1057 = vpop.f32.mrb[0].mxu0
      %v1058 = vadd.f32 0.0, %v1057
      %v1059 = vpop.f32.mrb[0].mxu0
      %v1060 = vpop.f32.mrb[0].mxu0
      %v1061 = vadd.f32 0.0, %v1060
      %v1062 = vpop.f32.mrb[0].mxu0
      %1063 = vdwg.mxu0
      %v1064 = vadd.f32 %v968, %v1050
      %v1065 = vadd.f32 %v969, %v1053
      %v1066 = vadd.f32 %v970, %v1058
      %v1067 = vadd.f32 %v971, %v1061
      %s1068 = scalar_lea.vmem %s3, 112
      %v1069 = vld [vmem:[%s1068] sm:$0xf]
      %v1070 = vld [vmem:[%s1068 + $0x4] sm:$0xf]
      %v1071 = vld [vmem:[%s1068 + $0x8] sm:$0xf]
      %v1072 = vld [vmem:[%s1068 + $0xc] sm:$0xf]
      %v1077 = vunpack.c.l.b16 %v1069
      %v1078 = vunpack.c.l.b16 %v1070
      %v1079 = vunpack.c.l.b16 %v1071
      %v1080 = vunpack.c.l.b16 %v1072
      %v1081 = vpack.c.b16 %v1078, %v1077
      %v1082 = vpack.c.b16 %v1080, %v1079
      %1083 = vrot.lane.b32.xlu0 %v446, 119
      %v1084 = vpop.permute.xlu0 %1083
      %1085 = vrot.lane.b32.xlu0 %v447, 119
      %v1086 = vpop.permute.xlu0 %1085
      %v1089 = vsel %vm453, %v1081, 0
      %v1092 = vsel %vm453, %v1082, 0
      %v1095 = vand.u32 %v1086, %v462
      %1097 = vmatprep.subr.bf16.mxu0 0
      %1098 = vmatpush1.bf16.msra.mxu0 %v1084
      %1099 = vmatprep.subr.bf16.mxu0 0
      %1100 = vmatpush1.bf16.msra.mxu0 %v1095
      %1101 = vmatprep.subr.bf16.mxu0 0
      %1102 = vmatpush1.bf16.msra.mxu0 0
      %1103 = vmatprep.subr.bf16.mxu0 0
      %1104 = vmatpush1.bf16.msra.mxu0 0
      %1105 = vmatprep.subr.bf16.mxu0 0
      %1106 = vmatpush1.bf16.msra.mxu0 0
      %1107 = vmatprep.subr.bf16.mxu0 0
      %1108 = vmatpush1.bf16.msra.mxu0 0
      %1109 = vmatprep.subr.bf16.mxu0 0
      %1110 = vmatpush1.bf16.msra.mxu0 0
      %1111 = vmatprep.subr.bf16.mxu0 0
      %1112 = vmatpush1.bf16.msra.mxu0 0
      %1113 = vmatprep.subr.bf16.mxu0 0
      %1114 = vmatpush1.bf16.msra.mxu0 0
      %1115 = vmatprep.subr.bf16.mxu0 0
      %1116 = vmatpush1.bf16.msra.mxu0 0
      %1117 = vmatprep.subr.bf16.mxu0 0
      %1118 = vmatpush1.bf16.msra.mxu0 0
      %1119 = vmatprep.subr.bf16.mxu0 0
      %1120 = vmatpush1.bf16.msra.mxu0 0
      %1121 = vmatprep.subr.bf16.mxu0 0
      %1122 = vmatpush1.bf16.msra.mxu0 0
      %1123 = vmatprep.subr.bf16.mxu0 0
      %1124 = vmatpush1.bf16.msra.mxu0 0
      %1125 = vmatprep.subr.bf16.mxu0 0
      %1126 = vmatpush1.bf16.msra.mxu0 0
      %1127 = vmatprep.subr.bf16.mxu0 0
      %1128 = vmatpush1.bf16.msra.mxu0 0
      %1129 = vmatprep.mubr.bf16.mxu0 0
      %1130 = vmatmul.mubr.bf16.gmra.mrb[0].mxu0 %v1089
      %v1131 = vpop.f32.mrb[0].mxu0
      %v1132 = vadd.f32 0.0, %v1131
      %v1133 = vpop.f32.mrb[0].mxu0
      %v1134 = vpop.f32.mrb[0].mxu0
      %v1135 = vadd.f32 0.0, %v1134
      %v1136 = vpop.f32.mrb[0].mxu0
      %1137 = vmatprep.mubr.bf16.mxu0 0
      %1138 = vmatmul.mubr.bf16.gmra.mrb[0].mxu0 %v1092
      %v1139 = vpop.f32.mrb[0].mxu0
      %v1140 = vadd.f32 0.0, %v1139
      %v1141 = vpop.f32.mrb[0].mxu0
      %v1142 = vpop.f32.mrb[0].mxu0
      %v1143 = vadd.f32 0.0, %v1142
      %v1144 = vpop.f32.mrb[0].mxu0
      %1145 = vdwg.mxu0
      %v1146 = vadd.f32 %v1064, %v1132
      %v1147 = vadd.f32 %v1065, %v1135
      %v1148 = vadd.f32 %v1066, %v1140
      %v1149 = vadd.f32 %v1067, %v1143
      %1150 = vrot.lane.b32.xlu0 %v601, 10
      %v1151 = vpop.permute.xlu0 %1150
      %v1153 = vmul.bf16 %v404, %v1151
      %v1154 = vmul.bf16 %v405, %v1151
      %v1155 = vmul.bf16 %v406, %v1151
      %s1156 = scalar_lea.vmem %s3, 128
      %v1157 = vld [vmem:[%s1156] sm:$0xf]
      %v1158 = vld [vmem:[%s1156 + $0x4] sm:$0xf]
      %v1159 = vld [vmem:[%s1156 + $0x8] sm:$0xf]
      %v1160 = vld [vmem:[%s1156 + $0xc] sm:$0xf]
      %v1165 = vunpack.c.l.b16 %v1157
      %v1166 = vunpack.c.l.b16 %v1158
      %v1167 = vunpack.c.l.b16 %v1159
      %v1168 = vunpack.c.l.b16 %v1160
      %v1169 = vpack.c.b16 %v1166, %v1165
      %v1170 = vpack.c.b16 %v1168, %v1167
      %v1174 = vunpack.c.l.b16 %v1153
      %v1175 = vunpack.c.l.b16 %v1154
      %v1176 = vunpack.c.l.b16 %v1155
      %v1177 = vpack.c.b16 %v1175, %v1174
      %v1178 = vpack.c.b16 %v1176, %v1176
      %1179 = vrot.lane.b32.xlu0 %v1177, 118
      %v1180 = vpop.permute.xlu0 %1179
      %1181 = vrot.lane.b32.xlu0 %v1178, 118
      %v1182 = vpop.permute.xlu0 %1181
      %v1185 = vsel %vm453, %v1169, 0
      %v1188 = vsel %vm453, %v1170, 0
      %v1191 = vand.u32 %v1182, %v462
      %1193 = vmatprep.subr.bf16.mxu0 0
      %1194 = vmatpush1.bf16.msra.mxu0 %v1180
      %1195 = vmatprep.subr.bf16.mxu0 0
      %1196 = vmatpush1.bf16.msra.mxu0 %v1191
      %1197 = vmatprep.subr.bf16.mxu0 0
      %1198 = vmatpush1.bf16.msra.mxu0 0
      %1199 = vmatprep.subr.bf16.mxu0 0
      %1200 = vmatpush1.bf16.msra.mxu0 0
      %1201 = vmatprep.subr.bf16.mxu0 0
      %1202 = vmatpush1.bf16.msra.mxu0 0
      %1203 = vmatprep.subr.bf16.mxu0 0
      %1204 = vmatpush1.bf16.msra.mxu0 0
      %1205 = vmatprep.subr.bf16.mxu0 0
      %1206 = vmatpush1.bf16.msra.mxu0 0
      %1207 = vmatprep.subr.bf16.mxu0 0
      %1208 = vmatpush1.bf16.msra.mxu0 0
      %1209 = vmatprep.subr.bf16.mxu0 0
      %1210 = vmatpush1.bf16.msra.mxu0 0
      %1211 = vmatprep.subr.bf16.mxu0 0
      %1212 = vmatpush1.bf16.msra.mxu0 0
      %1213 = vmatprep.subr.bf16.mxu0 0
      %1214 = vmatpush1.bf16.msra.mxu0 0
      %1215 = vmatprep.subr.bf16.mxu0 0
      %1216 = vmatpush1.bf16.msra.mxu0 0
      %1217 = vmatprep.subr.bf16.mxu0 0
      %1218 = vmatpush1.bf16.msra.mxu0 0
      %1219 = vmatprep.subr.bf16.mxu0 0
      %1220 = vmatpush1.bf16.msra.mxu0 0
      %1221 = vmatprep.subr.bf16.mxu0 0
      %1222 = vmatpush1.bf16.msra.mxu0 0
      %1223 = vmatprep.subr.bf16.mxu0 0
      %1224 = vmatpush1.bf16.msra.mxu0 0
      %1225 = vmatprep.mubr.bf16.mxu0 0
      %1226 = vmatmul.mubr.bf16.gmra.mrb[0].mxu0 %v1185
      %v1227 = vpop.f32.mrb[0].mxu0
      %v1228 = vadd.f32 0.0, %v1227
      %v1229 = vpop.f32.mrb[0].mxu0
      %v1230 = vpop.f32.mrb[0].mxu0
      %v1231 = vadd.f32 0.0, %v1230
      %v1232 = vpop.f32.mrb[0].mxu0
      %1233 = vmatprep.mubr.bf16.mxu0 0
      %1234 = vmatmul.mubr.bf16.gmra.mrb[0].mxu0 %v1188
      %v1235 = vpop.f32.mrb[0].mxu0
      %v1236 = vadd.f32 0.0, %v1235
      %v1237 = vpop.f32.mrb[0].mxu0
      %v1238 = vpop.f32.mrb[0].mxu0
      %v1239 = vadd.f32 0.0, %v1238
      %v1240 = vpop.f32.mrb[0].mxu0
      %1241 = vdwg.mxu0
      %v1242 = vadd.f32 %v1146, %v1228
      %v1243 = vadd.f32 %v1147, %v1231
      %v1244 = vadd.f32 %v1148, %v1236
      %v1245 = vadd.f32 %v1149, %v1239
      %1247 = vset.pattern.permute.xlu0 0
      %1248 = vperm.xlu0 %1247, %v379
      %v1249 = vpop.permute.xlu0 %1248
      %1252 = vset.pattern.permute.xlu0 0
      %1253 = vperm.xlu0 %1252, %v380
      %v1254 = vpop.permute.xlu0 %1253
      %1257 = vset.pattern.permute.xlu0 0
      %1258 = vperm.xlu0 %1257, %v381
      %v1259 = vpop.permute.xlu0 %1258
      %1262 = vset.pattern.permute.xlu0 0
      %1263 = vperm.xlu0 %1262, %v382
      %v1264 = vpop.permute.xlu0 %1263
      %v1266 = vadd.f32 %v1242, %v1249
      %v1267 = vadd.f32 %v1243, %v1254
      %v1268 = vadd.f32 %v1244, %v1259
      %v1269 = vadd.f32 %v1245, %v1264
      %vm1270 = vcmask 130048
      %v1271 = vsel %vm1270, %v1266, 0.0
      %1272 = vadd.xlane.f32.xlu0 %v1271
      %v1273 = vpop.xlane.xlu0 %1272
      %v1274 = vsel %vm1270, %v1267, 0.0
      %1275 = vadd.xlane.f32.xlu0 %v1274
      %v1276 = vpop.xlane.xlu0 %1275
      %v1277 = vsel %vm1270, %v1268, 0.0
      %1278 = vadd.xlane.f32.xlu0 %v1277
      %v1279 = vpop.xlane.xlu0 %1278
      %v1280 = vsel %vm1270, %v1269, 0.0
      %1281 = vadd.xlane.f32.xlu0 %v1280
      %v1282 = vpop.xlane.xlu0 %1281
      %v1283 = vrcp.pop 16.0
      %v1284 = vmul.f32 %v1273, %v1283
      %v1285 = vmul.f32 %v1276, %v1283
      %v1286 = vmul.f32 %v1279, %v1283
      %v1287 = vmul.f32 %v1282, %v1283
      %v1288 = vsub.f32 %v1266, %v1284
      %v1289 = vsub.f32 %v1267, %v1285
      %v1290 = vsub.f32 %v1268, %v1286
      %v1291 = vsub.f32 %v1269, %v1287
      %v1292 = vmul.f32 %v1288, %v1288
      %v1293 = vmul.f32 %v1289, %v1289
      %v1294 = vmul.f32 %v1290, %v1290
      %v1295 = vmul.f32 %v1291, %v1291
      %v1296 = vsel %vm1270, %v1292, 0.0
      %1297 = vadd.xlane.f32.xlu0 %v1296
      %v1298 = vpop.xlane.xlu0 %1297
      %v1299 = vsel %vm1270, %v1293, 0.0
      %1300 = vadd.xlane.f32.xlu0 %v1299
      %v1301 = vpop.xlane.xlu0 %1300
      %v1302 = vsel %vm1270, %v1294, 0.0
      %1303 = vadd.xlane.f32.xlu0 %v1302
      %v1304 = vpop.xlane.xlu0 %1303
      %v1305 = vsel %vm1270, %v1295, 0.0
      %1306 = vadd.xlane.f32.xlu0 %v1305
      %v1307 = vpop.xlane.xlu0 %1306
      %v1308 = vmul.f32 %v1298, %v1283
      %v1309 = vmul.f32 %v1301, %v1283
      %v1310 = vmul.f32 %v1304, %v1283
      %v1311 = vmul.f32 %v1307, %v1283
      %v1312 = vadd.f32 %v1308, 1e-05
      %v1313 = vadd.f32 %v1309, 1e-05
      %v1314 = vadd.f32 %v1310, 1e-05
      %v1315 = vadd.f32 %v1311, 1e-05
      %v1316 = vrsqrt.pop %v1312
      %v1317 = vrsqrt.pop %v1313
      %v1318 = vrsqrt.pop %v1314
      %v1319 = vrsqrt.pop %v1315
      %v1320 = vmul.f32 %v1288, %v1316
      %v1321 = vmul.f32 %v1289, %v1317
      %v1322 = vmul.f32 %v1290, %v1318
      %v1323 = vmul.f32 %v1291, %v1319
      %1325 = vset.pattern.permute.xlu0 0
      %1326 = vperm.xlu0 %1325, %v383
      %v1327 = vpop.permute.xlu0 %1326
      %1330 = vset.pattern.permute.xlu0 0
      %1331 = vperm.xlu0 %1330, %v384
      %v1332 = vpop.permute.xlu0 %1331
      %1335 = vset.pattern.permute.xlu0 0
      %1336 = vperm.xlu0 %1335, %v385
      %v1337 = vpop.permute.xlu0 %1336
      %1340 = vset.pattern.permute.xlu0 0
      %1341 = vperm.xlu0 %1340, %v386
      %v1342 = vpop.permute.xlu0 %1341
      %v1344 = vmul.f32 %v1320, %v1327
      %v1345 = vmul.f32 %v1321, %v1332
      %v1346 = vmul.f32 %v1322, %v1337
      %v1347 = vmul.f32 %v1323, %v1342
      %1349 = vset.pattern.permute.xlu0 0
      %1350 = vperm.xlu0 %1349, %v387
      %v1351 = vpop.permute.xlu0 %1350
      %1354 = vset.pattern.permute.xlu0 0
      %1355 = vperm.xlu0 %1354, %v388
      %v1356 = vpop.permute.xlu0 %1355
      %1359 = vset.pattern.permute.xlu0 0
      %1360 = vperm.xlu0 %1359, %v389
      %v1361 = vpop.permute.xlu0 %1360
      %1364 = vset.pattern.permute.xlu0 0
      %1365 = vperm.xlu0 %1364, %v390
      %v1366 = vpop.permute.xlu0 %1365
      %v1368 = vadd.f32 %v1344, %v1351
      %v1369 = vadd.f32 %v1345, %v1356
      %v1370 = vadd.f32 %v1346, %v1361
      %v1371 = vadd.f32 %v1347, %v1366
      %vm1372 = vcmp.ge.f32.partialorder %v1368, 0.0
      %vm1373 = vcmp.ge.f32.partialorder %v1369, 0.0
      %vm1374 = vcmp.ge.f32.partialorder %v1370, 0.0
      %vm1375 = vcmp.ge.f32.partialorder %v1371, 0.0
      %v1376 = vmul.f32 %v1368, 0.01
      %v1377 = vmul.f32 %v1369, 0.01
      %v1378 = vmul.f32 %v1370, 0.01
      %v1379 = vmul.f32 %v1371, 0.01
      %v1380 = vsel %vm1372, %v1368, %v1376
      %v1381 = vsel %vm1373, %v1369, %v1377
      %v1382 = vsel %vm1374, %v1370, %v1378
      %v1383 = vsel %vm1375, %v1371, %v1379
      %v1384 = vpack.c.bf16 %v1381, %v1380
      %v1385 = vpack.c.bf16 %v1383, %v1382
      %v1390 = vunpack.c.l.b16 %v395
      %v1391 = vunpack.c.l.b16 %v396
      %v1392 = vunpack.c.l.b16 %v397
      %v1393 = vunpack.c.l.b16 %v398
      %v1394 = vpack.c.b16 %v1391, %v1390
      %v1395 = vpack.c.b16 %v1393, %v1392
      %vm1396 = vcmask 31744
      %v1398 = vsel %vm1396, %v1394, 0
      %v1401 = vsel %vm1396, %v1395, 0
      %vm1403 = vcmask 1041408
      %v1405 = vsel %vm1403, %v378, 0
      %1407 = vmatprep.subr.bf16.mxu0 0
      %1408 = vmatpush1.bf16.msra.mxu0 %v1405
      %1409 = vmatprep.subr.bf16.mxu0 0
      %1410 = vmatpush1.bf16.msra.mxu0 0
      %1411 = vmatprep.subr.bf16.mxu0 0
      %1412 = vmatpush1.bf16.msra.mxu0 0
      %1413 = vmatprep.subr.bf16.mxu0 0
      %1414 = vmatpush1.bf16.msra.mxu0 0
      %1415 = vmatprep.subr.bf16.mxu0 0
      %1416 = vmatpush1.bf16.msra.mxu0 0
      %1417 = vmatprep.subr.bf16.mxu0 0
      %1418 = vmatpush1.bf16.msra.mxu0 0
      %1419 = vmatprep.subr.bf16.mxu0 0
      %1420 = vmatpush1.bf16.msra.mxu0 0
      %1421 = vmatprep.subr.bf16.mxu0 0
      %1422 = vmatpush1.bf16.msra.mxu0 0
      %1423 = vmatprep.subr.bf16.mxu0 0
      %1424 = vmatpush1.bf16.msra.mxu0 0
      %1425 = vmatprep.subr.bf16.mxu0 0
      %1426 = vmatpush1.bf16.msra.mxu0 0
      %1427 = vmatprep.subr.bf16.mxu0 0
      %1428 = vmatpush1.bf16.msra.mxu0 0
      %1429 = vmatprep.subr.bf16.mxu0 0
      %1430 = vmatpush1.bf16.msra.mxu0 0
      %1431 = vmatprep.subr.bf16.mxu0 0
      %1432 = vmatpush1.bf16.msra.mxu0 0
      %1433 = vmatprep.subr.bf16.mxu0 0
      %1434 = vmatpush1.bf16.msra.mxu0 0
      %1435 = vmatprep.subr.bf16.mxu0 0
      %1436 = vmatpush1.bf16.msra.mxu0 0
      %1437 = vmatprep.subr.bf16.mxu0 0
      %1438 = vmatpush1.bf16.msra.mxu0 0
      %1439 = vmatprep.mubr.bf16.mxu0 0
      %1440 = vmatmul.mubr.bf16.gmra.mrb[0].mxu0 %v1398
      %v1441 = vpop.f32.mrb[0].mxu0
      %v1442 = vadd.f32 0.0, %v1441
      %v1443 = vpop.f32.mrb[0].mxu0
      %v1444 = vpop.f32.mrb[0].mxu0
      %v1445 = vadd.f32 0.0, %v1444
      %v1446 = vpop.f32.mrb[0].mxu0
      %1447 = vmatprep.mubr.bf16.mxu0 0
      %1448 = vmatmul.mubr.bf16.gmra.mrb[0].mxu0 %v1401
      %v1449 = vpop.f32.mrb[0].mxu0
      %v1450 = vadd.f32 0.0, %v1449
      %v1451 = vpop.f32.mrb[0].mxu0
      %v1452 = vpop.f32.mrb[0].mxu0
      %v1453 = vadd.f32 0.0, %v1452
      %v1454 = vpop.f32.mrb[0].mxu0
      %1455 = vdwg.mxu0
      %v1460 = vunpack.c.l.b16 %v391
      %v1461 = vunpack.c.l.b16 %v392
      %v1462 = vunpack.c.l.b16 %v393
      %v1463 = vunpack.c.l.b16 %v394
      %v1464 = vpack.c.b16 %v1461, %v1460
      %v1465 = vpack.c.b16 %v1463, %v1462
      %vm1466 = vcmask 261120
      %v1468 = vsel %vm1466, %v1464, 0
      %v1471 = vsel %vm1466, %v1465, 0
      %1473 = vmatprep.subr.bf16.mxu0 0
      %1474 = vmatpush1.bf16.msra.mxu0 %v1384
      %1475 = vmatprep.subr.bf16.mxu0 0
      %1476 = vmatpush1.bf16.msra.mxu0 %v1385
      %1477 = vmatprep.subr.bf16.mxu0 0
      %1478 = vmatpush1.bf16.msra.mxu0 0
      %1479 = vmatprep.subr.bf16.mxu0 0
      %1480 = vmatpush1.bf16.msra.mxu0 0
      %1481 = vmatprep.subr.bf16.mxu0 0
      %1482 = vmatpush1.bf16.msra.mxu0 0
      %1483 = vmatprep.subr.bf16.mxu0 0
      %1484 = vmatpush1.bf16.msra.mxu0 0
      %1485 = vmatprep.subr.bf16.mxu0 0
      %1486 = vmatpush1.bf16.msra.mxu0 0
      %1487 = vmatprep.subr.bf16.mxu0 0
      %1488 = vmatpush1.bf16.msra.mxu0 0
      %1489 = vmatprep.subr.bf16.mxu0 0
      %1490 = vmatpush1.bf16.msra.mxu0 0
      %1491 = vmatprep.subr.bf16.mxu0 0
      %1492 = vmatpush1.bf16.msra.mxu0 0
      %1493 = vmatprep.subr.bf16.mxu0 0
      %1494 = vmatpush1.bf16.msra.mxu0 0
      %1495 = vmatprep.subr.bf16.mxu0 0
      %1496 = vmatpush1.bf16.msra.mxu0 0
      %1497 = vmatprep.subr.bf16.mxu0 0
      %1498 = vmatpush1.bf16.msra.mxu0 0
      %1499 = vmatprep.subr.bf16.mxu0 0
      %1500 = vmatpush1.bf16.msra.mxu0 0
      %1501 = vmatprep.subr.bf16.mxu0 0
      %1502 = vmatpush1.bf16.msra.mxu0 0
      %1503 = vmatprep.subr.bf16.mxu0 0
      %1504 = vmatpush1.bf16.msra.mxu0 0
      %1505 = vmatprep.mubr.bf16.mxu0 0
      %1506 = vmatmul.mubr.bf16.gmra.mrb[0].mxu0 %v1468
      %v1507 = vpop.f32.mrb[0].mxu0
      %v1508 = vadd.f32 %v1442, %v1507
      %v1509 = vpop.f32.mrb[0].mxu0
      %v1510 = vpop.f32.mrb[0].mxu0
      %v1511 = vadd.f32 %v1445, %v1510
      %v1512 = vpop.f32.mrb[0].mxu0
      %1513 = vmatprep.mubr.bf16.mxu0 0
      %1514 = vmatmul.mubr.bf16.gmra.mrb[0].mxu0 %v1471
      %v1515 = vpop.f32.mrb[0].mxu0
      %v1516 = vadd.f32 %v1450, %v1515
      %v1517 = vpop.f32.mrb[0].mxu0
      %v1518 = vpop.f32.mrb[0].mxu0
      %v1519 = vadd.f32 %v1453, %v1518
      %v1520 = vpop.f32.mrb[0].mxu0
      %1521 = vdwg.mxu0
      %1523 = vset.pattern.permute.xlu0 0
      %1524 = vperm.xlu0 %1523, %v399
      %v1525 = vpop.permute.xlu0 %1524
      %1528 = vset.pattern.permute.xlu0 0
      %1529 = vperm.xlu0 %1528, %v400
      %v1530 = vpop.permute.xlu0 %1529
      %1533 = vset.pattern.permute.xlu0 0
      %1534 = vperm.xlu0 %1533, %v401
      %v1535 = vpop.permute.xlu0 %1534
      %1538 = vset.pattern.permute.xlu0 0
      %1539 = vperm.xlu0 %1538, %v402
      %v1540 = vpop.permute.xlu0 %1539
      %v1542 = vadd.f32 %v1508, %v1525
      %v1543 = vadd.f32 %v1511, %v1530
      %v1544 = vadd.f32 %v1516, %v1535
      %v1545 = vadd.f32 %v1519, %v1540
      %v1546 = vpack.c.bf16 %v1543, %v1542
      %v1547 = vpack.c.bf16 %v1545, %v1544
      %v1550 = vunpack.c.l.b16 %v1546
      %v1551 = vunpack.c.h.b16 %v1546
      %v1552 = vunpack.c.l.b16 %v1547
      %v1553 = vunpack.c.h.b16 %v1547
      %v1554 = vpack.c.b16 %v1550, %v1550
      %v1555 = vpack.c.b16 %v1551, %v1551
      %v1556 = vpack.c.b16 %v1552, %v1552
      %v1557 = vpack.c.b16 %v1553, %v1553
      %vm1562 = vcmask 125952
      %1563 = vst.msk [vmem:[%s376] sm:$0xf] %vm1562, %v1554
      %1564 = vst.msk [vmem:[%s376 + $0x4] sm:$0xf] %vm1562, %v1555
      %1565 = vst.msk [vmem:[%s376 + $0x8] sm:$0xf] %vm1562, %v1556
      %1566 = vst.msk [vmem:[%s376 + $0xc] sm:$0xf] %vm1562, %v1557
      %p1567 = scmp.lt.s32.totalorder %s21, 1
      %s1568 = scalar_select %p1567, %s21, 1
      %s1569 = smul.addr %s1568, 4
      %s1570 = smul.addr %s1569, 4
      %s1571 = scalar_lea.vmem %s10, %s1570
      // Predicated region
      $region61: #{tpu_custom_call.1} parent=59 // pred_check
        %p1572 = pneg %p259
      $region62: #{tpu_custom_call.1} parent=59 // pred_check_branch
        %1574 = sbr.rel (%p1572) target = $region64
      $region63: #{tpu_custom_call.1} parent=59 // pred_region
        _
      $region64: #{tpu_custom_call.1} parent=59 // pred_fallthru
        _
    $region60: #{tpu_custom_call.1} parent=5 // pred_fallthru
      _
    %p1575 = scmp.le.s32.totalorder 2, %s16
    // Predicated region
    $region65: #{tpu_custom_call.1} parent=5 // pred_check
      %p1576 = pneg %p1575
    $region66: #{tpu_custom_call.1} parent=5 // pred_check_branch
      %1578 = sbr.rel (%p1576) target = $region68
    $region67: #{tpu_custom_call.1} parent=5 // pred_region
      %s1579 = ssub.s32 %s16, 2
      // Predicated region
      $region69: #{tpu_custom_call.1} parent=67 // pred_check
        %p1580 = pneg %p265
      $region70: #{tpu_custom_call.1} parent=67 // pred_check_branch
        %1582 = sbr.rel (%p1580) target = $region72
      $region71: #{tpu_custom_call.1} parent=67 // pred_region
        %p1583 = scmp.lt.s32.totalorder %s22, 1
        %s1584 = scalar_select %p1583, %s22, 1
        %s1585 = smul.addr %s1584, 4
        %s1586 = smul.addr %s1585, 4
        %s1587 = scalar_lea.vmem %s10, %s1586
      $region72: #{tpu_custom_call.1} parent=67 // pred_fallthru
        _
    $region68: #{tpu_custom_call.1} parent=5 // pred_fallthru
      _
  $region6: #{tpu_custom_call.1} parent=0 // loop_footer
    %s20 = sadd.s32 1, %s16
  $region7: #{tpu_custom_call.1} parent=0 // loop_footer_branch
    %15 = sbr.rel target = $region3
  $region8: #{tpu_custom_call.1} parent=0 // loop_exit
    _

</llo_original>
